<compile_context>
chip_gen: v5e
topology: v5e:2x2
jax: 0.10.0
libtpu: 0.0.40
codegen_flags: <defaults>
</compile_context>

<pallas_src>
import jax
import jax.numpy as jnp
from jax import lax
from jax.experimental import pallas as pl
from jax.experimental.pallas import tpu as pltpu


def bilstm_fc_kernel(ids_ref,        # SMEM (B*T,) int32 token ids, batch-major (b*T + t)
                     emb_tbl_ref,    # VMEM (V, 1, E) embedding table
                     w_ref,          # VMEM (E + 2H + 1, 8H): [wih_packed; whh_blockdiag; bias]
                     fc_ref,         # VMEM (2H + 1, C): [fc_w; fc_b]
                     out_ref,        # VMEM (B, C)
                     emb_scr_ref,    # VMEM scratch (T*B, E)  gathered, time-major embeddings
                     xp_ref):        # VMEM scratch (T*B, 8H) hoisted input projections
    TB, E = emb_scr_ref.shape
    H8 = xp_ref.shape[-1]           # 8H (gate/direction interleaved lanes)
    H = H8 // 8
    B, C = out_ref.shape
    T = TB // B

    # ---- Prologue 1: fused embedding lookup (ids from SMEM, table rows from VMEM) --------
    for t in range(T):              # static loops; 16 tiny row copies, off the critical path
        for b in range(B):
            tok = ids_ref[b * T + t]
            emb_scr_ref[pl.ds(t * B + b, 1), :] = emb_tbl_ref[tok]      # (1, E)

    # ---- Prologue 2: ONE projection matmul for all timesteps & both directions ----------
    wih = w_ref[pl.ds(0, E), :]                       # (E, 8H)
    bias = w_ref[pl.ds(E + 2 * H, 1), :]              # (1, 8H) fused b_ih + b_hh, both dirs
    xp_ref[...] = (jnp.dot(emb_scr_ref[...], wih,
                           preferred_element_type=jnp.float32) + bias)  # full-tile store

    # ---- Recurrence: one fused block-diagonal MXU matmul per step, state in registers ---
    whh = w_ref[pl.ds(E, 2 * H), :]                   # (2H, 8H) read once (~16 vregs)
    lane = lax.broadcasted_iota(jnp.int32, (B, H8), 1)            # hoisted (no CSE in-loop)
    is_fwd = (lane % (2 * H)) < H                     # fwd-direction lanes within each gate
    is_g = (lane >= 4 * H) & (lane < 6 * H)           # tanh (g) gate lanes

    h_cat = jnp.zeros((B, 2 * H), jnp.float32)        # packed [h_fwd | h_bwd]
    c_cat = jnp.zeros((B, 2 * H), jnp.float32)        # packed [c_fwd | c_bwd]

    for s in range(T):              # fully unrolled (T static), state carried in registers
        # projections: fwd consumes timestep s, bwd consumes timestep T-1-s.
        # Independent of h_cat -> overlaps with the recurrent matmul.
        x_f = xp_ref[pl.ds(s * B, B), :]
        x_b = xp_ref[pl.ds((T - 1 - s) * B, B), :]
        x_sel = jnp.where(is_fwd, x_f, x_b)

        rec = jnp.dot(h_cat, whh, preferred_element_type=jnp.float32)   # (B, 8H), 1 MXU op
        pre = rec + x_sel

        # single-tanh activation: sigmoid(x) = 0.5*(tanh(x/2)+1); g gate keeps plain tanh
        scaled = jnp.where(is_g, pre, 0.5 * pre)
        th = jnp.tanh(scaled)
        act = jnp.where(is_g, th, 0.5 * th + 0.5)

        i_cat = act[:, 0 * H:2 * H]                   # each slice is packed [fwd | bwd]
        f_cat = act[:, 2 * H:4 * H]
        g_cat = act[:, 4 * H:6 * H]
        o_cat = act[:, 6 * H:8 * H]
        c_cat = f_cat * c_cat + i_cat * g_cat
        h_cat = o_cat * jnp.tanh(c_cat)               # already in [h_fwd | h_bwd] order

    # ---- Epilogue: h_cat == torch.cat((hidden[-2], hidden[-1]), dim=1); final Linear ----
    fc_w = fc_ref[pl.ds(0, 2 * H), :]
    fc_b = fc_ref[pl.ds(2 * H, 1), :]
    out_ref[...] = (jnp.dot(h_cat, fc_w, preferred_element_type=jnp.float32) + fc_b)


def pack_params(params):
    """One-time (init-time) weight packing for the kernel (feedback item 6)."""
    H = params["whh_f"].shape[0]
    E = params["wih_f"].shape[0]

    def interleave(a_f, a_b):
        # (R, 4H) x 2 -> (R, 8H) with per-gate direction interleave [i_f,i_b,f_f,f_b,...]
        R = a_f.shape[0]
        return jnp.stack([a_f.reshape(R, 4, H),
                          a_b.reshape(R, 4, H)], axis=2).reshape(R, 8 * H)

    wih_p = interleave(params["wih_f"], params["wih_b"])            # (E, 8H)
    b_p = interleave(params["b_f"], params["b_b"])                  # (1, 8H)
    z = jnp.zeros_like(params["whh_f"])                             # (H, 4H)
    whh_bd = jnp.concatenate([interleave(params["whh_f"], z),       # h_fwd rows
                              interleave(z, params["whh_b"])],      # h_bwd rows
                             axis=0)                                # (2H, 8H) block-diagonal

    w_slab = jnp.concatenate([wih_p, whh_bd, b_p], axis=0)          # (E + 2H + 1, 8H)
    fc_slab = jnp.concatenate([params["fc_w"], params["fc_b"]], axis=0)   # (2H + 1, C)
    emb_tbl = params["embedding"][:, None, :]                       # (V, 1, E)

    return {"emb_tbl": emb_tbl, "w_slab": w_slab, "fc_slab": fc_slab,
            "H": H, "E": E, "C": params["fc_b"].shape[-1]}


def intent_classifier_forward(x_ids, packed):
    """x_ids: (B, T) int32 token ids.  Returns logits (B, num_classes) float32."""
    B, T = x_ids.shape
    E, H, C = packed["E"], packed["H"], packed["C"]
    ids_flat = x_ids.reshape(-1).astype(jnp.int32)                  # (B*T,) batch-major

    smem = pl.BlockSpec(memory_space=pltpu.MemorySpace.SMEM)
    vmem = pl.BlockSpec(memory_space=pltpu.MemorySpace.VMEM)

    return pl.pallas_call(
        bilstm_fc_kernel,
        out_shape=jax.ShapeDtypeStruct((B, C), jnp.float32),
        in_specs=[smem, vmem, vmem, vmem],
        out_specs=vmem,
        scratch_shapes=[pltpu.VMEM((T * B, E), jnp.float32),
                        pltpu.VMEM((T * B, 8 * H), jnp.float32)],
    )(ids_flat, packed["emb_tbl"], packed["w_slab"], packed["fc_slab"])


def reference_forward(x_ids, params):
    """Pure-JAX reference (eval-mode PyTorch biLSTM semantics) for validation."""
    emb = params["embedding"][x_ids]                                # (B, T, E)
    B, T, _ = emb.shape
    H = params["whh_f"].shape[0]

    def cell(x, h, c, wih, whh, b):
        g = x @ wih + h @ whh + b
        i = jax.nn.sigmoid(g[:, :H])
        f = jax.nn.sigmoid(g[:, H:2 * H])
        gg = jnp.tanh(g[:, 2 * H:3 * H])
        o = jax.nn.sigmoid(g[:, 3 * H:])
        c_new = f * c + i * gg
        return o * jnp.tanh(c_new), c_new

    hf = jnp.zeros((B, H)); cf = jnp.zeros((B, H))
    hb = jnp.zeros((B, H)); cb = jnp.zeros((B, H))
    for t in range(T):
        hf, cf = cell(emb[:, t], hf, cf, params["wih_f"], params["whh_f"], params["b_f"])
        hb, cb = cell(emb[:, T - 1 - t], hb, cb, params["wih_b"], params["whh_b"], params["b_b"])
    hidden = jnp.concatenate([hf, hb], axis=1)
    return hidden @ params["fc_w"] + params["fc_b"]


def init_params(key, input_size, hidden_size, embedding_dim, num_classes):
    """Deterministic synthetic parameters matching the nn.Module shapes."""
    ks = jax.random.split(key, 10)
    H, E, C = hidden_size, embedding_dim, num_classes
    s = 1.0 / jnp.sqrt(jnp.float32(H))

    def u(k, shape):
        return jax.random.uniform(k, shape, jnp.float32, -s, s)

    return {
        # nn.Embedding(input_size, embedding_dim)
        "embedding": jax.random.normal(ks[0], (input_size, E), jnp.float32),
        # forward-direction LSTM (weight_ih_l0^T, weight_hh_l0^T, b_ih + b_hh), gate order [i,f,g,o]
        "wih_f": u(ks[1], (E, 4 * H)),
        "whh_f": u(ks[2], (H, 4 * H)),
        "b_f":   u(ks[3], (1, 4 * H)),
        # backward-direction LSTM (weight_ih_l0_reverse^T, ...)
        "wih_b": u(ks[4], (E, 4 * H)),
        "whh_b": u(ks[5], (H, 4 * H)),
        "b_b":   u(ks[6], (1, 4 * H)),
        # nn.Linear(2H, num_classes): stored transposed (2H, C), bias (1, C)
        "fc_w":  u(ks[7], (2 * H, C)),
        "fc_b":  u(ks[8], (1, C)),
    }


if __name__ == "__main__":
    INPUT_SIZE = 50      # vocab
    HIDDEN_SIZE = 32
    EMBEDDING_DIM = 32
    NUM_CLASSES = 8
    B, T = 2, 8

    key = jax.random.PRNGKey(0)
    k_params, k_x = jax.random.split(key)

    params = init_params(k_params, INPUT_SIZE, HIDDEN_SIZE, EMBEDDING_DIM, NUM_CLASSES)
    packed = pack_params(params)          # one-time packing (init time, not per forward)
    x = jax.random.randint(k_x, (B, T), 0, INPUT_SIZE, dtype=jnp.int32)

    logits = intent_classifier_forward(x, packed)
    jax.block_until_ready(logits)

    assert logits.shape == (B, NUM_CLASSES), logits.shape
    assert logits.dtype == jnp.float32

    ref = reference_forward(x, params)
    assert jnp.allclose(logits, ref, rtol=1e-4, atol=1e-4), \
        float(jnp.max(jnp.abs(logits - ref)))

    print("KERNEL_OK")
</pallas_src>

<mosaic_0001>
module attributes {stable_mosaic.version = 11 : i64} {
  func.func @bilstm_fc_kernel(%arg0: memref<16xi32, #tpu.memory_space<smem>>, %arg1: memref<50x1x32xf32, #tpu.memory_space<vmem>>, %arg2: memref<97x256xf32, #tpu.memory_space<vmem>>, %arg3: memref<65x8xf32, #tpu.memory_space<vmem>>, %arg4: memref<2x8xf32, #tpu.memory_space<vmem>>, %arg5: memref<16x32xf32, #tpu.memory_space<vmem>>, %arg6: memref<16x256xf32, #tpu.memory_space<vmem>>) attributes {dimension_semantics = [], scalar_prefetch = 0 : i64, scratch_operands = 2 : i64, tpu.core_type = #tpu.core_type<tc>} {
    %c0 = arith.constant 0 : index
    %0 = memref.load %arg0[%c0] : memref<16xi32, #tpu.memory_space<smem>>
    %1 = arith.index_cast %0 : i32 to index
    %c0_0 = arith.constant 0 : index
    %c0_1 = arith.constant 0 : index
    %2 = vector.load %arg1[%1, %c0_0, %c0_1] : memref<50x1x32xf32, #tpu.memory_space<vmem>>, vector<1x1x32xf32>
    %3 = vector.shape_cast %2 : vector<1x1x32xf32> to vector<1x32xf32>
    %c0_2 = arith.constant 0 : index
    %c0_3 = arith.constant 0 : index
    %4 = vector.load %arg5[%c0_2, %c0_3] : memref<16x32xf32, #tpu.memory_space<vmem>>, vector<1x32xf32>
    tpu.vector_store %arg5[%c0_2, %c0_3], %3 {strides = array<i32>} : memref<16x32xf32, #tpu.memory_space<vmem>>, vector<1x32xf32>,
    %c8 = arith.constant 8 : index
    %5 = memref.load %arg0[%c8] : memref<16xi32, #tpu.memory_space<smem>>
    %6 = arith.index_cast %5 : i32 to index
    %c0_4 = arith.constant 0 : index
    %c0_5 = arith.constant 0 : index
    %7 = vector.load %arg1[%6, %c0_4, %c0_5] : memref<50x1x32xf32, #tpu.memory_space<vmem>>, vector<1x1x32xf32>
    %8 = vector.shape_cast %7 : vector<1x1x32xf32> to vector<1x32xf32>
    %c1 = arith.constant 1 : index
    %c0_6 = arith.constant 0 : index
    %9 = vector.load %arg5[%c1, %c0_6] : memref<16x32xf32, #tpu.memory_space<vmem>>, vector<1x32xf32>
    tpu.vector_store %arg5[%c1, %c0_6], %8 {strides = array<i32>} : memref<16x32xf32, #tpu.memory_space<vmem>>, vector<1x32xf32>,
    %c1_7 = arith.constant 1 : index
    %10 = memref.load %arg0[%c1_7] : memref<16xi32, #tpu.memory_space<smem>>
    %11 = arith.index_cast %10 : i32 to index
    %c0_8 = arith.constant 0 : index
    %c0_9 = arith.constant 0 : index
    %12 = vector.load %arg1[%11, %c0_8, %c0_9] : memref<50x1x32xf32, #tpu.memory_space<vmem>>, vector<1x1x32xf32>
    %13 = vector.shape_cast %12 : vector<1x1x32xf32> to vector<1x32xf32>
    %c2 = arith.constant 2 : index
    %c0_10 = arith.constant 0 : index
    %14 = vector.load %arg5[%c2, %c0_10] : memref<16x32xf32, #tpu.memory_space<vmem>>, vector<1x32xf32>
    tpu.vector_store %arg5[%c2, %c0_10], %13 {strides = array<i32>} : memref<16x32xf32, #tpu.memory_space<vmem>>, vector<1x32xf32>,
    %c9 = arith.constant 9 : index
    %15 = memref.load %arg0[%c9] : memref<16xi32, #tpu.memory_space<smem>>
    %16 = arith.index_cast %15 : i32 to index
    %c0_11 = arith.constant 0 : index
    %c0_12 = arith.constant 0 : index
    %17 = vector.load %arg1[%16, %c0_11, %c0_12] : memref<50x1x32xf32, #tpu.memory_space<vmem>>, vector<1x1x32xf32>
    %18 = vector.shape_cast %17 : vector<1x1x32xf32> to vector<1x32xf32>
    %c3 = arith.constant 3 : index
    %c0_13 = arith.constant 0 : index
    %19 = vector.load %arg5[%c3, %c0_13] : memref<16x32xf32, #tpu.memory_space<vmem>>, vector<1x32xf32>
    tpu.vector_store %arg5[%c3, %c0_13], %18 {strides = array<i32>} : memref<16x32xf32, #tpu.memory_space<vmem>>, vector<1x32xf32>,
    %c2_14 = arith.constant 2 : index
    %20 = memref.load %arg0[%c2_14] : memref<16xi32, #tpu.memory_space<smem>>
    %21 = arith.index_cast %20 : i32 to index
    %c0_15 = arith.constant 0 : index
    %c0_16 = arith.constant 0 : index
    %22 = vector.load %arg1[%21, %c0_15, %c0_16] : memref<50x1x32xf32, #tpu.memory_space<vmem>>, vector<1x1x32xf32>
    %23 = vector.shape_cast %22 : vector<1x1x32xf32> to vector<1x32xf32>
    %c4 = arith.constant 4 : index
    %c0_17 = arith.constant 0 : index
    %24 = vector.load %arg5[%c4, %c0_17] : memref<16x32xf32, #tpu.memory_space<vmem>>, vector<1x32xf32>
    tpu.vector_store %arg5[%c4, %c0_17], %23 {strides = array<i32>} : memref<16x32xf32, #tpu.memory_space<vmem>>, vector<1x32xf32>,
    %c10 = arith.constant 10 : index
    %25 = memref.load %arg0[%c10] : memref<16xi32, #tpu.memory_space<smem>>
    %26 = arith.index_cast %25 : i32 to index
    %c0_18 = arith.constant 0 : index
    %c0_19 = arith.constant 0 : index
    %27 = vector.load %arg1[%26, %c0_18, %c0_19] : memref<50x1x32xf32, #tpu.memory_space<vmem>>, vector<1x1x32xf32>
    %28 = vector.shape_cast %27 : vector<1x1x32xf32> to vector<1x32xf32>
    %c5 = arith.constant 5 : index
    %c0_20 = arith.constant 0 : index
    %29 = vector.load %arg5[%c5, %c0_20] : memref<16x32xf32, #tpu.memory_space<vmem>>, vector<1x32xf32>
    tpu.vector_store %arg5[%c5, %c0_20], %28 {strides = array<i32>} : memref<16x32xf32, #tpu.memory_space<vmem>>, vector<1x32xf32>,
    %c3_21 = arith.constant 3 : index
    %30 = memref.load %arg0[%c3_21] : memref<16xi32, #tpu.memory_space<smem>>
    %31 = arith.index_cast %30 : i32 to index
    %c0_22 = arith.constant 0 : index
    %c0_23 = arith.constant 0 : index
    %32 = vector.load %arg1[%31, %c0_22, %c0_23] : memref<50x1x32xf32, #tpu.memory_space<vmem>>, vector<1x1x32xf32>
    %33 = vector.shape_cast %32 : vector<1x1x32xf32> to vector<1x32xf32>
    %c6 = arith.constant 6 : index
    %c0_24 = arith.constant 0 : index
    %34 = vector.load %arg5[%c6, %c0_24] : memref<16x32xf32, #tpu.memory_space<vmem>>, vector<1x32xf32>
    tpu.vector_store %arg5[%c6, %c0_24], %33 {strides = array<i32>} : memref<16x32xf32, #tpu.memory_space<vmem>>, vector<1x32xf32>,
    %c11 = arith.constant 11 : index
    %35 = memref.load %arg0[%c11] : memref<16xi32, #tpu.memory_space<smem>>
    %36 = arith.index_cast %35 : i32 to index
    %c0_25 = arith.constant 0 : index
    %c0_26 = arith.constant 0 : index
    %37 = vector.load %arg1[%36, %c0_25, %c0_26] : memref<50x1x32xf32, #tpu.memory_space<vmem>>, vector<1x1x32xf32>
    %38 = vector.shape_cast %37 : vector<1x1x32xf32> to vector<1x32xf32>
    %c7 = arith.constant 7 : index
    %c0_27 = arith.constant 0 : index
    %39 = vector.load %arg5[%c7, %c0_27] : memref<16x32xf32, #tpu.memory_space<vmem>>, vector<1x32xf32>
    tpu.vector_store %arg5[%c7, %c0_27], %38 {strides = array<i32>} : memref<16x32xf32, #tpu.memory_space<vmem>>, vector<1x32xf32>,
    %c4_28 = arith.constant 4 : index
    %40 = memref.load %arg0[%c4_28] : memref<16xi32, #tpu.memory_space<smem>>
    %41 = arith.index_cast %40 : i32 to index
    %c0_29 = arith.constant 0 : index
    %c0_30 = arith.constant 0 : index
    %42 = vector.load %arg1[%41, %c0_29, %c0_30] : memref<50x1x32xf32, #tpu.memory_space<vmem>>, vector<1x1x32xf32>
    %43 = vector.shape_cast %42 : vector<1x1x32xf32> to vector<1x32xf32>
    %c8_31 = arith.constant 8 : index
    %c0_32 = arith.constant 0 : index
    %44 = vector.load %arg5[%c8_31, %c0_32] : memref<16x32xf32, #tpu.memory_space<vmem>>, vector<1x32xf32>
    tpu.vector_store %arg5[%c8_31, %c0_32], %43 {strides = array<i32>} : memref<16x32xf32, #tpu.memory_space<vmem>>, vector<1x32xf32>,
    %c12 = arith.constant 12 : index
    %45 = memref.load %arg0[%c12] : memref<16xi32, #tpu.memory_space<smem>>
    %46 = arith.index_cast %45 : i32 to index
    %c0_33 = arith.constant 0 : index
    %c0_34 = arith.constant 0 : index
    %47 = vector.load %arg1[%46, %c0_33, %c0_34] : memref<50x1x32xf32, #tpu.memory_space<vmem>>, vector<1x1x32xf32>
    %48 = vector.shape_cast %47 : vector<1x1x32xf32> to vector<1x32xf32>
    %c9_35 = arith.constant 9 : index
    %c0_36 = arith.constant 0 : index
    %49 = vector.load %arg5[%c9_35, %c0_36] : memref<16x32xf32, #tpu.memory_space<vmem>>, vector<1x32xf32>
    tpu.vector_store %arg5[%c9_35, %c0_36], %48 {strides = array<i32>} : memref<16x32xf32, #tpu.memory_space<vmem>>, vector<1x32xf32>,
    %c5_37 = arith.constant 5 : index
    %50 = memref.load %arg0[%c5_37] : memref<16xi32, #tpu.memory_space<smem>>
    %51 = arith.index_cast %50 : i32 to index
    %c0_38 = arith.constant 0 : index
    %c0_39 = arith.constant 0 : index
    %52 = vector.load %arg1[%51, %c0_38, %c0_39] : memref<50x1x32xf32, #tpu.memory_space<vmem>>, vector<1x1x32xf32>
    %53 = vector.shape_cast %52 : vector<1x1x32xf32> to vector<1x32xf32>
    %c10_40 = arith.constant 10 : index
    %c0_41 = arith.constant 0 : index
    %54 = vector.load %arg5[%c10_40, %c0_41] : memref<16x32xf32, #tpu.memory_space<vmem>>, vector<1x32xf32>
    tpu.vector_store %arg5[%c10_40, %c0_41], %53 {strides = array<i32>} : memref<16x32xf32, #tpu.memory_space<vmem>>, vector<1x32xf32>,
    %c13 = arith.constant 13 : index
    %55 = memref.load %arg0[%c13] : memref<16xi32, #tpu.memory_space<smem>>
    %56 = arith.index_cast %55 : i32 to index
    %c0_42 = arith.constant 0 : index
    %c0_43 = arith.constant 0 : index
    %57 = vector.load %arg1[%56, %c0_42, %c0_43] : memref<50x1x32xf32, #tpu.memory_space<vmem>>, vector<1x1x32xf32>
    %58 = vector.shape_cast %57 : vector<1x1x32xf32> to vector<1x32xf32>
    %c11_44 = arith.constant 11 : index
    %c0_45 = arith.constant 0 : index
    %59 = vector.load %arg5[%c11_44, %c0_45] : memref<16x32xf32, #tpu.memory_space<vmem>>, vector<1x32xf32>
    tpu.vector_store %arg5[%c11_44, %c0_45], %58 {strides = array<i32>} : memref<16x32xf32, #tpu.memory_space<vmem>>, vector<1x32xf32>,
    %c6_46 = arith.constant 6 : index
    %60 = memref.load %arg0[%c6_46] : memref<16xi32, #tpu.memory_space<smem>>
    %61 = arith.index_cast %60 : i32 to index
    %c0_47 = arith.constant 0 : index
    %c0_48 = arith.constant 0 : index
    %62 = vector.load %arg1[%61, %c0_47, %c0_48] : memref<50x1x32xf32, #tpu.memory_space<vmem>>, vector<1x1x32xf32>
    %63 = vector.shape_cast %62 : vector<1x1x32xf32> to vector<1x32xf32>
    %c12_49 = arith.constant 12 : index
    %c0_50 = arith.constant 0 : index
    %64 = vector.load %arg5[%c12_49, %c0_50] : memref<16x32xf32, #tpu.memory_space<vmem>>, vector<1x32xf32>
    tpu.vector_store %arg5[%c12_49, %c0_50], %63 {strides = array<i32>} : memref<16x32xf32, #tpu.memory_space<vmem>>, vector<1x32xf32>,
    %c14 = arith.constant 14 : index
    %65 = memref.load %arg0[%c14] : memref<16xi32, #tpu.memory_space<smem>>
    %66 = arith.index_cast %65 : i32 to index
    %c0_51 = arith.constant 0 : index
    %c0_52 = arith.constant 0 : index
    %67 = vector.load %arg1[%66, %c0_51, %c0_52] : memref<50x1x32xf32, #tpu.memory_space<vmem>>, vector<1x1x32xf32>
    %68 = vector.shape_cast %67 : vector<1x1x32xf32> to vector<1x32xf32>
    %c13_53 = arith.constant 13 : index
    %c0_54 = arith.constant 0 : index
    %69 = vector.load %arg5[%c13_53, %c0_54] : memref<16x32xf32, #tpu.memory_space<vmem>>, vector<1x32xf32>
    tpu.vector_store %arg5[%c13_53, %c0_54], %68 {strides = array<i32>} : memref<16x32xf32, #tpu.memory_space<vmem>>, vector<1x32xf32>,
    %c7_55 = arith.constant 7 : index
    %70 = memref.load %arg0[%c7_55] : memref<16xi32, #tpu.memory_space<smem>>
    %71 = arith.index_cast %70 : i32 to index
    %c0_56 = arith.constant 0 : index
    %c0_57 = arith.constant 0 : index
    %72 = vector.load %arg1[%71, %c0_56, %c0_57] : memref<50x1x32xf32, #tpu.memory_space<vmem>>, vector<1x1x32xf32>
    %73 = vector.shape_cast %72 : vector<1x1x32xf32> to vector<1x32xf32>
    %c14_58 = arith.constant 14 : index
    %c0_59 = arith.constant 0 : index
    %74 = vector.load %arg5[%c14_58, %c0_59] : memref<16x32xf32, #tpu.memory_space<vmem>>, vector<1x32xf32>
    tpu.vector_store %arg5[%c14_58, %c0_59], %73 {strides = array<i32>} : memref<16x32xf32, #tpu.memory_space<vmem>>, vector<1x32xf32>,
    %c15 = arith.constant 15 : index
    %75 = memref.load %arg0[%c15] : memref<16xi32, #tpu.memory_space<smem>>
    %76 = arith.index_cast %75 : i32 to index
    %c0_60 = arith.constant 0 : index
    %c0_61 = arith.constant 0 : index
    %77 = vector.load %arg1[%76, %c0_60, %c0_61] : memref<50x1x32xf32, #tpu.memory_space<vmem>>, vector<1x1x32xf32>
    %78 = vector.shape_cast %77 : vector<1x1x32xf32> to vector<1x32xf32>
    %c15_62 = arith.constant 15 : index
    %c0_63 = arith.constant 0 : index
    %79 = vector.load %arg5[%c15_62, %c0_63] : memref<16x32xf32, #tpu.memory_space<vmem>>, vector<1x32xf32>
    tpu.vector_store %arg5[%c15_62, %c0_63], %78 {strides = array<i32>} : memref<16x32xf32, #tpu.memory_space<vmem>>, vector<1x32xf32>,
    %c0_64 = arith.constant 0 : index
    %c0_65 = arith.constant 0 : index
    %80 = vector.load %arg2[%c0_64, %c0_65] : memref<97x256xf32, #tpu.memory_space<vmem>>, vector<32x256xf32>
    %c96 = arith.constant 96 : index
    %c0_66 = arith.constant 0 : index
    %81 = vector.load %arg2[%c96, %c0_66] : memref<97x256xf32, #tpu.memory_space<vmem>>, vector<1x256xf32>
    %c0_67 = arith.constant 0 : index
    %c0_68 = arith.constant 0 : index
    %82 = vector.load %arg5[%c0_67, %c0_68] : memref<16x32xf32, #tpu.memory_space<vmem>>, vector<16x32xf32>
    %cst = arith.constant dense<0.000000e+00> : vector<16x256xf32>
    %83 = tpu.matmul %82, %80, %cst {dimension_numbers = #tpu.dot_dimension_numbers<[1], [0], [0], [1], [0, 0, 1, 1], [], []>} : vector<16x32xf32>, vector<32x256xf32>, vector<16x256xf32> -> vector<16x256xf32>
    %84 = vector.broadcast %81 : vector<1x256xf32> to vector<16x256xf32>
    %85 = arith.addf %83, %84 : vector<16x256xf32>
    %c0_69 = arith.constant 0 : index
    %c0_70 = arith.constant 0 : index
    %86 = vector.load %arg6[%c0_69, %c0_70] : memref<16x256xf32, #tpu.memory_space<vmem>>, vector<16x256xf32>
    tpu.vector_store %arg6[%c0_69, %c0_70], %85 {strides = array<i32>} : memref<16x256xf32, #tpu.memory_space<vmem>>, vector<16x256xf32>,
    %c32 = arith.constant 32 : index
    %c0_71 = arith.constant 0 : index
    %87 = vector.load %arg2[%c32, %c0_71] : memref<97x256xf32, #tpu.memory_space<vmem>>, vector<64x256xf32>
    %88 = tpu.iota {dimensions = array<i32: 1>} : vector<2x256xi32>
    %c64_i32 = arith.constant 64 : i32
    %c0_i32 = arith.constant 0 : i32
    %89 = arith.cmpi eq, %c64_i32, %c0_i32 : i32
    %c1_i32 = arith.constant 1 : i32
    %90 = arith.select %89, %c1_i32, %c64_i32 : i32
    %91 = vector.broadcast %90 : i32 to vector<2x256xi32>
    %92 = arith.remsi %88, %91 : vector<2x256xi32>
    %c0_i32_72 = arith.constant 0 : i32
    %93 = vector.broadcast %c0_i32_72 : i32 to vector<2x256xi32>
    %94 = arith.cmpi ne, %92, %93 : vector<2x256xi32>
    %c0_i32_73 = arith.constant 0 : i32
    %95 = vector.broadcast %c0_i32_73 : i32 to vector<2x256xi32>
    %96 = arith.cmpi slt, %92, %95 : vector<2x256xi32>
    %c0_i32_74 = arith.constant 0 : i32
    %97 = arith.cmpi slt, %90, %c0_i32_74 : i32
    %98 = vector.broadcast %97 : i1 to vector<2x256xi1>
    %99 = vector.broadcast %98 : vector<2x256xi1> to vector<2x256xi1>
    %100 = arith.xori %96, %99 : vector<2x256xi1>
    %101 = arith.andi %100, %94 : vector<2x256xi1>
    %102 = vector.broadcast %90 : i32 to vector<2x256xi32>
    %103 = arith.addi %92, %102 : vector<2x256xi32>
    %104 = arith.select %101, %103, %92 : vector<2x256xi1>, vector<2x256xi32>
    %c32_i32 = arith.constant 32 : i32
    %105 = vector.broadcast %c32_i32 : i32 to vector<2x256xi32>
    %106 = arith.cmpi slt, %104, %105 : vector<2x256xi32>
    %c128_i32 = arith.constant 128 : i32
    %107 = vector.broadcast %c128_i32 : i32 to vector<2x256xi32>
    %108 = arith.cmpi sge, %88, %107 : vector<2x256xi32>
    %c192_i32 = arith.constant 192 : i32
    %109 = vector.broadcast %c192_i32 : i32 to vector<2x256xi32>
    %110 = arith.cmpi slt, %88, %109 : vector<2x256xi32>
    %111 = arith.andi %108, %110 : vector<2x256xi1>
    %cst_75 = arith.constant 0.000000e+00 : f32
    %112 = vector.broadcast %cst_75 : f32 to vector<2x64xf32>
    %cst_76 = arith.constant 0.000000e+00 : f32
    %113 = vector.broadcast %cst_76 : f32 to vector<2x64xf32>
    %c0_77 = arith.constant 0 : index
    %c0_78 = arith.constant 0 : index
    %114 = vector.load %arg6[%c0_77, %c0_78] : memref<16x256xf32, #tpu.memory_space<vmem>>, vector<2x256xf32>
    %c14_79 = arith.constant 14 : index
    %c0_80 = arith.constant 0 : index
    %115 = vector.load %arg6[%c14_79, %c0_80] : memref<16x256xf32, #tpu.memory_space<vmem>>, vector<2x256xf32>
    %116 = arith.select %106, %114, %115 : vector<2x256xi1>, vector<2x256xf32>
    %cst_81 = arith.constant dense<0.000000e+00> : vector<2x256xf32>
    %117 = tpu.matmul %112, %87, %cst_81 {dimension_numbers = #tpu.dot_dimension_numbers<[1], [0], [0], [1], [0, 0, 1, 1], [], []>} : vector<2x64xf32>, vector<64x256xf32>, vector<2x256xf32> -> vector<2x256xf32>
    %118 = arith.addf %117, %116 : vector<2x256xf32>
    %cst_82 = arith.constant 5.000000e-01 : f32
    %119 = vector.broadcast %cst_82 : f32 to vector<2x256xf32>
    %120 = arith.mulf %119, %118 : vector<2x256xf32>
    %121 = arith.select %111, %118, %120 : vector<2x256xi1>, vector<2x256xf32>
    %122 = math.tanh %121 : vector<2x256xf32>
    %cst_83 = arith.constant 5.000000e-01 : f32
    %123 = vector.broadcast %cst_83 : f32 to vector<2x256xf32>
    %124 = arith.mulf %123, %122 : vector<2x256xf32>
    %cst_84 = arith.constant 5.000000e-01 : f32
    %125 = vector.broadcast %cst_84 : f32 to vector<2x256xf32>
    %126 = arith.addf %124, %125 : vector<2x256xf32>
    %127 = arith.select %111, %122, %126 : vector<2x256xi1>, vector<2x256xf32>
    %128 = vector.extract_strided_slice %127 {offsets = [0, 0], sizes = [2, 64], strides = [1, 1]} : vector<2x256xf32> to vector<2x64xf32>
    %129 = vector.extract_strided_slice %127 {offsets = [0, 64], sizes = [2, 64], strides = [1, 1]} : vector<2x256xf32> to vector<2x64xf32>
    %130 = vector.extract_strided_slice %127 {offsets = [0, 128], sizes = [2, 64], strides = [1, 1]} : vector<2x256xf32> to vector<2x64xf32>
    %131 = vector.extract_strided_slice %127 {offsets = [0, 192], sizes = [2, 64], strides = [1, 1]} : vector<2x256xf32> to vector<2x64xf32>
    %132 = arith.mulf %129, %113 : vector<2x64xf32>
    %133 = arith.mulf %128, %130 : vector<2x64xf32>
    %134 = arith.addf %132, %133 : vector<2x64xf32>
    %135 = math.tanh %134 : vector<2x64xf32>
    %136 = arith.mulf %131, %135 : vector<2x64xf32>
    %c2_85 = arith.constant 2 : index
    %c0_86 = arith.constant 0 : index
    %137 = vector.load %arg6[%c2_85, %c0_86] : memref<16x256xf32, #tpu.memory_space<vmem>>, vector<2x256xf32>
    %c12_87 = arith.constant 12 : index
    %c0_88 = arith.constant 0 : index
    %138 = vector.load %arg6[%c12_87, %c0_88] : memref<16x256xf32, #tpu.memory_space<vmem>>, vector<2x256xf32>
    %139 = arith.select %106, %137, %138 : vector<2x256xi1>, vector<2x256xf32>
    %cst_89 = arith.constant dense<0.000000e+00> : vector<2x256xf32>
    %140 = tpu.matmul %136, %87, %cst_89 {dimension_numbers = #tpu.dot_dimension_numbers<[1], [0], [0], [1], [0, 0, 1, 1], [], []>} : vector<2x64xf32>, vector<64x256xf32>, vector<2x256xf32> -> vector<2x256xf32>
    %141 = arith.addf %140, %139 : vector<2x256xf32>
    %cst_90 = arith.constant 5.000000e-01 : f32
    %142 = vector.broadcast %cst_90 : f32 to vector<2x256xf32>
    %143 = arith.mulf %142, %141 : vector<2x256xf32>
    %144 = arith.select %111, %141, %143 : vector<2x256xi1>, vector<2x256xf32>
    %145 = math.tanh %144 : vector<2x256xf32>
    %cst_91 = arith.constant 5.000000e-01 : f32
    %146 = vector.broadcast %cst_91 : f32 to vector<2x256xf32>
    %147 = arith.mulf %146, %145 : vector<2x256xf32>
    %cst_92 = arith.constant 5.000000e-01 : f32
    %148 = vector.broadcast %cst_92 : f32 to vector<2x256xf32>
    %149 = arith.addf %147, %148 : vector<2x256xf32>
    %150 = arith.select %111, %145, %149 : vector<2x256xi1>, vector<2x256xf32>
    %151 = vector.extract_strided_slice %150 {offsets = [0, 0], sizes = [2, 64], strides = [1, 1]} : vector<2x256xf32> to vector<2x64xf32>
    %152 = vector.extract_strided_slice %150 {offsets = [0, 64], sizes = [2, 64], strides = [1, 1]} : vector<2x256xf32> to vector<2x64xf32>
    %153 = vector.extract_strided_slice %150 {offsets = [0, 128], sizes = [2, 64], strides = [1, 1]} : vector<2x256xf32> to vector<2x64xf32>
    %154 = vector.extract_strided_slice %150 {offsets = [0, 192], sizes = [2, 64], strides = [1, 1]} : vector<2x256xf32> to vector<2x64xf32>
    %155 = arith.mulf %152, %134 : vector<2x64xf32>
    %156 = arith.mulf %151, %153 : vector<2x64xf32>
    %157 = arith.addf %155, %156 : vector<2x64xf32>
    %158 = math.tanh %157 : vector<2x64xf32>
    %159 = arith.mulf %154, %158 : vector<2x64xf32>
    %c4_93 = arith.constant 4 : index
    %c0_94 = arith.constant 0 : index
    %160 = vector.load %arg6[%c4_93, %c0_94] : memref<16x256xf32, #tpu.memory_space<vmem>>, vector<2x256xf32>
    %c10_95 = arith.constant 10 : index
    %c0_96 = arith.constant 0 : index
    %161 = vector.load %arg6[%c10_95, %c0_96] : memref<16x256xf32, #tpu.memory_space<vmem>>, vector<2x256xf32>
    %162 = arith.select %106, %160, %161 : vector<2x256xi1>, vector<2x256xf32>
    %cst_97 = arith.constant dense<0.000000e+00> : vector<2x256xf32>
    %163 = tpu.matmul %159, %87, %cst_97 {dimension_numbers = #tpu.dot_dimension_numbers<[1], [0], [0], [1], [0, 0, 1, 1], [], []>} : vector<2x64xf32>, vector<64x256xf32>, vector<2x256xf32> -> vector<2x256xf32>
    %164 = arith.addf %163, %162 : vector<2x256xf32>
    %cst_98 = arith.constant 5.000000e-01 : f32
    %165 = vector.broadcast %cst_98 : f32 to vector<2x256xf32>
    %166 = arith.mulf %165, %164 : vector<2x256xf32>
    %167 = arith.select %111, %164, %166 : vector<2x256xi1>, vector<2x256xf32>
    %168 = math.tanh %167 : vector<2x256xf32>
    %cst_99 = arith.constant 5.000000e-01 : f32
    %169 = vector.broadcast %cst_99 : f32 to vector<2x256xf32>
    %170 = arith.mulf %169, %168 : vector<2x256xf32>
    %cst_100 = arith.constant 5.000000e-01 : f32
    %171 = vector.broadcast %cst_100 : f32 to vector<2x256xf32>
    %172 = arith.addf %170, %171 : vector<2x256xf32>
    %173 = arith.select %111, %168, %172 : vector<2x256xi1>, vector<2x256xf32>
    %174 = vector.extract_strided_slice %173 {offsets = [0, 0], sizes = [2, 64], strides = [1, 1]} : vector<2x256xf32> to vector<2x64xf32>
    %175 = vector.extract_strided_slice %173 {offsets = [0, 64], sizes = [2, 64], strides = [1, 1]} : vector<2x256xf32> to vector<2x64xf32>
    %176 = vector.extract_strided_slice %173 {offsets = [0, 128], sizes = [2, 64], strides = [1, 1]} : vector<2x256xf32> to vector<2x64xf32>
    %177 = vector.extract_strided_slice %173 {offsets = [0, 192], sizes = [2, 64], strides = [1, 1]} : vector<2x256xf32> to vector<2x64xf32>
    %178 = arith.mulf %175, %157 : vector<2x64xf32>
    %179 = arith.mulf %174, %176 : vector<2x64xf32>
    %180 = arith.addf %178, %179 : vector<2x64xf32>
    %181 = math.tanh %180 : vector<2x64xf32>
    %182 = arith.mulf %177, %181 : vector<2x64xf32>
    %c6_101 = arith.constant 6 : index
    %c0_102 = arith.constant 0 : index
    %183 = vector.load %arg6[%c6_101, %c0_102] : memref<16x256xf32, #tpu.memory_space<vmem>>, vector<2x256xf32>
    %c8_103 = arith.constant 8 : index
    %c0_104 = arith.constant 0 : index
    %184 = vector.load %arg6[%c8_103, %c0_104] : memref<16x256xf32, #tpu.memory_space<vmem>>, vector<2x256xf32>
    %185 = arith.select %106, %183, %184 : vector<2x256xi1>, vector<2x256xf32>
    %cst_105 = arith.constant dense<0.000000e+00> : vector<2x256xf32>
    %186 = tpu.matmul %182, %87, %cst_105 {dimension_numbers = #tpu.dot_dimension_numbers<[1], [0], [0], [1], [0, 0, 1, 1], [], []>} : vector<2x64xf32>, vector<64x256xf32>, vector<2x256xf32> -> vector<2x256xf32>
    %187 = arith.addf %186, %185 : vector<2x256xf32>
    %cst_106 = arith.constant 5.000000e-01 : f32
    %188 = vector.broadcast %cst_106 : f32 to vector<2x256xf32>
    %189 = arith.mulf %188, %187 : vector<2x256xf32>
    %190 = arith.select %111, %187, %189 : vector<2x256xi1>, vector<2x256xf32>
    %191 = math.tanh %190 : vector<2x256xf32>
    %cst_107 = arith.constant 5.000000e-01 : f32
    %192 = vector.broadcast %cst_107 : f32 to vector<2x256xf32>
    %193 = arith.mulf %192, %191 : vector<2x256xf32>
    %cst_108 = arith.constant 5.000000e-01 : f32
    %194 = vector.broadcast %cst_108 : f32 to vector<2x256xf32>
    %195 = arith.addf %193, %194 : vector<2x256xf32>
    %196 = arith.select %111, %191, %195 : vector<2x256xi1>, vector<2x256xf32>
    %197 = vector.extract_strided_slice %196 {offsets = [0, 0], sizes = [2, 64], strides = [1, 1]} : vector<2x256xf32> to vector<2x64xf32>
    %198 = vector.extract_strided_slice %196 {offsets = [0, 64], sizes = [2, 64], strides = [1, 1]} : vector<2x256xf32> to vector<2x64xf32>
    %199 = vector.extract_strided_slice %196 {offsets = [0, 128], sizes = [2, 64], strides = [1, 1]} : vector<2x256xf32> to vector<2x64xf32>
    %200 = vector.extract_strided_slice %196 {offsets = [0, 192], sizes = [2, 64], strides = [1, 1]} : vector<2x256xf32> to vector<2x64xf32>
    %201 = arith.mulf %198, %180 : vector<2x64xf32>
    %202 = arith.mulf %197, %199 : vector<2x64xf32>
    %203 = arith.addf %201, %202 : vector<2x64xf32>
    %204 = math.tanh %203 : vector<2x64xf32>
    %205 = arith.mulf %200, %204 : vector<2x64xf32>
    %c8_109 = arith.constant 8 : index
    %c0_110 = arith.constant 0 : index
    %206 = vector.load %arg6[%c8_109, %c0_110] : memref<16x256xf32, #tpu.memory_space<vmem>>, vector<2x256xf32>
    %c6_111 = arith.constant 6 : index
    %c0_112 = arith.constant 0 : index
    %207 = vector.load %arg6[%c6_111, %c0_112] : memref<16x256xf32, #tpu.memory_space<vmem>>, vector<2x256xf32>
    %208 = arith.select %106, %206, %207 : vector<2x256xi1>, vector<2x256xf32>
    %cst_113 = arith.constant dense<0.000000e+00> : vector<2x256xf32>
    %209 = tpu.matmul %205, %87, %cst_113 {dimension_numbers = #tpu.dot_dimension_numbers<[1], [0], [0], [1], [0, 0, 1, 1], [], []>} : vector<2x64xf32>, vector<64x256xf32>, vector<2x256xf32> -> vector<2x256xf32>
    %210 = arith.addf %209, %208 : vector<2x256xf32>
    %cst_114 = arith.constant 5.000000e-01 : f32
    %211 = vector.broadcast %cst_114 : f32 to vector<2x256xf32>
    %212 = arith.mulf %211, %210 : vector<2x256xf32>
    %213 = arith.select %111, %210, %212 : vector<2x256xi1>, vector<2x256xf32>
    %214 = math.tanh %213 : vector<2x256xf32>
    %cst_115 = arith.constant 5.000000e-01 : f32
    %215 = vector.broadcast %cst_115 : f32 to vector<2x256xf32>
    %216 = arith.mulf %215, %214 : vector<2x256xf32>
    %cst_116 = arith.constant 5.000000e-01 : f32
    %217 = vector.broadcast %cst_116 : f32 to vector<2x256xf32>
    %218 = arith.addf %216, %217 : vector<2x256xf32>
    %219 = arith.select %111, %214, %218 : vector<2x256xi1>, vector<2x256xf32>
    %220 = vector.extract_strided_slice %219 {offsets = [0, 0], sizes = [2, 64], strides = [1, 1]} : vector<2x256xf32> to vector<2x64xf32>
    %221 = vector.extract_strided_slice %219 {offsets = [0, 64], sizes = [2, 64], strides = [1, 1]} : vector<2x256xf32> to vector<2x64xf32>
    %222 = vector.extract_strided_slice %219 {offsets = [0, 128], sizes = [2, 64], strides = [1, 1]} : vector<2x256xf32> to vector<2x64xf32>
    %223 = vector.extract_strided_slice %219 {offsets = [0, 192], sizes = [2, 64], strides = [1, 1]} : vector<2x256xf32> to vector<2x64xf32>
    %224 = arith.mulf %221, %203 : vector<2x64xf32>
    %225 = arith.mulf %220, %222 : vector<2x64xf32>
    %226 = arith.addf %224, %225 : vector<2x64xf32>
    %227 = math.tanh %226 : vector<2x64xf32>
    %228 = arith.mulf %223, %227 : vector<2x64xf32>
    %c10_117 = arith.constant 10 : index
    %c0_118 = arith.constant 0 : index
    %229 = vector.load %arg6[%c10_117, %c0_118] : memref<16x256xf32, #tpu.memory_space<vmem>>, vector<2x256xf32>
    %c4_119 = arith.constant 4 : index
    %c0_120 = arith.constant 0 : index
    %230 = vector.load %arg6[%c4_119, %c0_120] : memref<16x256xf32, #tpu.memory_space<vmem>>, vector<2x256xf32>
    %231 = arith.select %106, %229, %230 : vector<2x256xi1>, vector<2x256xf32>
    %cst_121 = arith.constant dense<0.000000e+00> : vector<2x256xf32>
    %232 = tpu.matmul %228, %87, %cst_121 {dimension_numbers = #tpu.dot_dimension_numbers<[1], [0], [0], [1], [0, 0, 1, 1], [], []>} : vector<2x64xf32>, vector<64x256xf32>, vector<2x256xf32> -> vector<2x256xf32>
    %233 = arith.addf %232, %231 : vector<2x256xf32>
    %cst_122 = arith.constant 5.000000e-01 : f32
    %234 = vector.broadcast %cst_122 : f32 to vector<2x256xf32>
    %235 = arith.mulf %234, %233 : vector<2x256xf32>
    %236 = arith.select %111, %233, %235 : vector<2x256xi1>, vector<2x256xf32>
    %237 = math.tanh %236 : vector<2x256xf32>
    %cst_123 = arith.constant 5.000000e-01 : f32
    %238 = vector.broadcast %cst_123 : f32 to vector<2x256xf32>
    %239 = arith.mulf %238, %237 : vector<2x256xf32>
    %cst_124 = arith.constant 5.000000e-01 : f32
    %240 = vector.broadcast %cst_124 : f32 to vector<2x256xf32>
    %241 = arith.addf %239, %240 : vector<2x256xf32>
    %242 = arith.select %111, %237, %241 : vector<2x256xi1>, vector<2x256xf32>
    %243 = vector.extract_strided_slice %242 {offsets = [0, 0], sizes = [2, 64], strides = [1, 1]} : vector<2x256xf32> to vector<2x64xf32>
    %244 = vector.extract_strided_slice %242 {offsets = [0, 64], sizes = [2, 64], strides = [1, 1]} : vector<2x256xf32> to vector<2x64xf32>
    %245 = vector.extract_strided_slice %242 {offsets = [0, 128], sizes = [2, 64], strides = [1, 1]} : vector<2x256xf32> to vector<2x64xf32>
    %246 = vector.extract_strided_slice %242 {offsets = [0, 192], sizes = [2, 64], strides = [1, 1]} : vector<2x256xf32> to vector<2x64xf32>
    %247 = arith.mulf %244, %226 : vector<2x64xf32>
    %248 = arith.mulf %243, %245 : vector<2x64xf32>
    %249 = arith.addf %247, %248 : vector<2x64xf32>
    %250 = math.tanh %249 : vector<2x64xf32>
    %251 = arith.mulf %246, %250 : vector<2x64xf32>
    %c12_125 = arith.constant 12 : index
    %c0_126 = arith.constant 0 : index
    %252 = vector.load %arg6[%c12_125, %c0_126] : memref<16x256xf32, #tpu.memory_space<vmem>>, vector<2x256xf32>
    %c2_127 = arith.constant 2 : index
    %c0_128 = arith.constant 0 : index
    %253 = vector.load %arg6[%c2_127, %c0_128] : memref<16x256xf32, #tpu.memory_space<vmem>>, vector<2x256xf32>
    %254 = arith.select %106, %252, %253 : vector<2x256xi1>, vector<2x256xf32>
    %cst_129 = arith.constant dense<0.000000e+00> : vector<2x256xf32>
    %255 = tpu.matmul %251, %87, %cst_129 {dimension_numbers = #tpu.dot_dimension_numbers<[1], [0], [0], [1], [0, 0, 1, 1], [], []>} : vector<2x64xf32>, vector<64x256xf32>, vector<2x256xf32> -> vector<2x256xf32>
    %256 = arith.addf %255, %254 : vector<2x256xf32>
    %cst_130 = arith.constant 5.000000e-01 : f32
    %257 = vector.broadcast %cst_130 : f32 to vector<2x256xf32>
    %258 = arith.mulf %257, %256 : vector<2x256xf32>
    %259 = arith.select %111, %256, %258 : vector<2x256xi1>, vector<2x256xf32>
    %260 = math.tanh %259 : vector<2x256xf32>
    %cst_131 = arith.constant 5.000000e-01 : f32
    %261 = vector.broadcast %cst_131 : f32 to vector<2x256xf32>
    %262 = arith.mulf %261, %260 : vector<2x256xf32>
    %cst_132 = arith.constant 5.000000e-01 : f32
    %263 = vector.broadcast %cst_132 : f32 to vector<2x256xf32>
    %264 = arith.addf %262, %263 : vector<2x256xf32>
    %265 = arith.select %111, %260, %264 : vector<2x256xi1>, vector<2x256xf32>
    %266 = vector.extract_strided_slice %265 {offsets = [0, 0], sizes = [2, 64], strides = [1, 1]} : vector<2x256xf32> to vector<2x64xf32>
    %267 = vector.extract_strided_slice %265 {offsets = [0, 64], sizes = [2, 64], strides = [1, 1]} : vector<2x256xf32> to vector<2x64xf32>
    %268 = vector.extract_strided_slice %265 {offsets = [0, 128], sizes = [2, 64], strides = [1, 1]} : vector<2x256xf32> to vector<2x64xf32>
    %269 = vector.extract_strided_slice %265 {offsets = [0, 192], sizes = [2, 64], strides = [1, 1]} : vector<2x256xf32> to vector<2x64xf32>
    %270 = arith.mulf %267, %249 : vector<2x64xf32>
    %271 = arith.mulf %266, %268 : vector<2x64xf32>
    %272 = arith.addf %270, %271 : vector<2x64xf32>
    %273 = math.tanh %272 : vector<2x64xf32>
    %274 = arith.mulf %269, %273 : vector<2x64xf32>
    %c14_133 = arith.constant 14 : index
    %c0_134 = arith.constant 0 : index
    %275 = vector.load %arg6[%c14_133, %c0_134] : memref<16x256xf32, #tpu.memory_space<vmem>>, vector<2x256xf32>
    %c0_135 = arith.constant 0 : index
    %c0_136 = arith.constant 0 : index
    %276 = vector.load %arg6[%c0_135, %c0_136] : memref<16x256xf32, #tpu.memory_space<vmem>>, vector<2x256xf32>
    %277 = arith.select %106, %275, %276 : vector<2x256xi1>, vector<2x256xf32>
    %cst_137 = arith.constant dense<0.000000e+00> : vector<2x256xf32>
    %278 = tpu.matmul %274, %87, %cst_137 {dimension_numbers = #tpu.dot_dimension_numbers<[1], [0], [0], [1], [0, 0, 1, 1], [], []>} : vector<2x64xf32>, vector<64x256xf32>, vector<2x256xf32> -> vector<2x256xf32>
    %279 = arith.addf %278, %277 : vector<2x256xf32>
    %cst_138 = arith.constant 5.000000e-01 : f32
    %280 = vector.broadcast %cst_138 : f32 to vector<2x256xf32>
    %281 = arith.mulf %280, %279 : vector<2x256xf32>
    %282 = arith.select %111, %279, %281 : vector<2x256xi1>, vector<2x256xf32>
    %283 = math.tanh %282 : vector<2x256xf32>
    %cst_139 = arith.constant 5.000000e-01 : f32
    %284 = vector.broadcast %cst_139 : f32 to vector<2x256xf32>
    %285 = arith.mulf %284, %283 : vector<2x256xf32>
    %cst_140 = arith.constant 5.000000e-01 : f32
    %286 = vector.broadcast %cst_140 : f32 to vector<2x256xf32>
    %287 = arith.addf %285, %286 : vector<2x256xf32>
    %288 = arith.select %111, %283, %287 : vector<2x256xi1>, vector<2x256xf32>
    %289 = vector.extract_strided_slice %288 {offsets = [0, 0], sizes = [2, 64], strides = [1, 1]} : vector<2x256xf32> to vector<2x64xf32>
    %290 = vector.extract_strided_slice %288 {offsets = [0, 64], sizes = [2, 64], strides = [1, 1]} : vector<2x256xf32> to vector<2x64xf32>
    %291 = vector.extract_strided_slice %288 {offsets = [0, 128], sizes = [2, 64], strides = [1, 1]} : vector<2x256xf32> to vector<2x64xf32>
    %292 = vector.extract_strided_slice %288 {offsets = [0, 192], sizes = [2, 64], strides = [1, 1]} : vector<2x256xf32> to vector<2x64xf32>
    %293 = arith.mulf %290, %272 : vector<2x64xf32>
    %294 = arith.mulf %289, %291 : vector<2x64xf32>
    %295 = arith.addf %293, %294 : vector<2x64xf32>
    %296 = math.tanh %295 : vector<2x64xf32>
    %297 = arith.mulf %292, %296 : vector<2x64xf32>
    %c0_141 = arith.constant 0 : index
    %c0_142 = arith.constant 0 : index
    %298 = vector.load %arg3[%c0_141, %c0_142] : memref<65x8xf32, #tpu.memory_space<vmem>>, vector<64x8xf32>
    %c64 = arith.constant 64 : index
    %c0_143 = arith.constant 0 : index
    %299 = vector.load %arg3[%c64, %c0_143] : memref<65x8xf32, #tpu.memory_space<vmem>>, vector<1x8xf32>
    %cst_144 = arith.constant dense<0.000000e+00> : vector<2x8xf32>
    %300 = tpu.matmul %297, %298, %cst_144 {dimension_numbers = #tpu.dot_dimension_numbers<[1], [0], [0], [1], [0, 0, 1, 1], [], []>} : vector<2x64xf32>, vector<64x8xf32>, vector<2x8xf32> -> vector<2x8xf32>
    %301 = vector.broadcast %299 : vector<1x8xf32> to vector<2x8xf32>
    %302 = arith.addf %300, %301 : vector<2x8xf32>
    %c0_145 = arith.constant 0 : index
    %c0_146 = arith.constant 0 : index
    %303 = vector.load %arg4[%c0_145, %c0_146] : memref<2x8xf32, #tpu.memory_space<vmem>>, vector<2x8xf32>
    tpu.vector_store %arg4[%c0_145, %c0_146], %302 {strides = array<i32>} : memref<2x8xf32, #tpu.memory_space<vmem>>, vector<2x8xf32>,
    return
  }
}

</mosaic_0001>

<llo_original>
// kernel: tpu_custom_call.1
$region0: #{tpu_custom_call.1}
  #allocation0 [shape = 'u32[]', space=smem, size = 0x4, offset = 0x4, fixed_abs, tag = 'smem constant byte address 0x4 - core index']
  #allocation1 [shape = 'u32[72,128]{1,0:T(1,128)}', space=vmem, size = 0x9000, scoped, tag = 'internal scratch']
  #allocation2 [shape = 'f32[16,32]{1,0:T(8,128)}', space=vmem, size = 0x2000, scoped, tag = 'scratch operand']
  #allocation3 [shape = 'f32[16,256]{1,0:T(8,128)}', space=vmem, size = 0x4000, scoped, tag = 'scratch operand']
  %s0 = inlined_call_operand.vmem [shape: s32[16], index: 0, kind: input, shape index: {}]
  %s1 = inlined_call_operand.vmem [shape: f32[50,1,32], index: 1, kind: input, shape index: {}]
  %s2 = inlined_call_operand.hbm [shape: f32[97,256], index: 2, kind: input, shape index: {}]
  %s3 = inlined_call_operand.vmem [shape: f32[65,8], index: 3, kind: input, shape index: {}]
  %s4 = inlined_call_operand.hbm [shape: f32[2,8], index: 4, kind: output, shape index: {}]
  %s5 = sld [smem:[#allocation0]]
  $region34: #{tpu_custom_call.1} parent=0
    _
  %s7 = ssub.s32 1, %s5
  %s8 = scalar_select 0, %s7, %s5
  $region1: #{tpu_custom_call.1} parent=0
    #allocation4 [shape = 'u8[512]{0}', space=smem, size = 0x200, scoped, tag = 'input window, operand 0, single buffered']
    #allocation5 [shape = 's32[1]{0}', space=sflag, size = 0x4, scoped, tag = 'scoped memory for tpu_custom_call.1']
    #allocation6 [shape = 's32[1]{0}', space=sflag, size = 0x4, scoped, tag = 'scoped memory for tpu_custom_call.1']
    #allocation7 [shape = 's32[1]{0}', space=sflag, size = 0x4, scoped, tag = 'scoped memory for tpu_custom_call.1']
    #allocation8 [shape = 'u8[106496]{0}', space=vmem, size = 0x1a000, scoped, tag = 'input window, operand 2, single buffered']
    #allocation9 [shape = 'u8[1024]{0}', space=vmem, size = 0x400, scoped, tag = 'output window, operand 0, single buffered']
    %9 = vsyncpa [#allocation7], 0
    %10 = vsyncpa [#allocation5], 0
    %11 = vsyncpa [#allocation6], 0
    // Predicated region
    $region2: #{tpu_custom_call.1} parent=1 // pred_check
      _
    $region3: #{tpu_custom_call.1} parent=1 // pred_check_branch
      %13 = sbr.rel (0) target = $region5
    $region4: #{tpu_custom_call.1} parent=1 // pred_region
      %15 = vsyncadd [#allocation7], 0
      %s17 = sshll.u32 %s0, 4
      %s18 = int_to_ptr.vmem [resolvable:$true] %s17
      %20 = dma.vmem_to_smem %s18, 16, [#allocation4], [#allocation7]
    $region5: #{tpu_custom_call.1} parent=1 // pred_fallthru
      _
    // Predicated region
    $region6: #{tpu_custom_call.1} parent=1 // pred_check
      _
    $region7: #{tpu_custom_call.1} parent=1 // pred_check_branch
      %22 = sbr.rel (0) target = $region9
    $region8: #{tpu_custom_call.1} parent=1 // pred_region
      _
    $region9: #{tpu_custom_call.1} parent=1 // pred_fallthru
      _
    // Predicated region
    $region10: #{tpu_custom_call.1} parent=1 // pred_check
      _
    $region11: #{tpu_custom_call.1} parent=1 // pred_check_branch
      %24 = sbr.rel (0) target = $region13
    $region12: #{tpu_custom_call.1} parent=1 // pred_region
      %26 = vsyncadd [#allocation5], 0
      %s27 = sshll.u32 %s2, 4
      %s28 = int_to_ptr.hbm [resolvable:$true] %s27
      %s29 = sshll.u32 [#allocation8], 4
      %s30 = int_to_ptr.vmem [resolvable:$true] %s29
      %35 = dma.hbm_to_vmem [thread:$0]  %s28, 3328, %s30, [#allocation5], 256, 256, 16
    $region13: #{tpu_custom_call.1} parent=1 // pred_fallthru
      _
    // Predicated region
    $region14: #{tpu_custom_call.1} parent=1 // pred_check
      _
    $region15: #{tpu_custom_call.1} parent=1 // pred_check_branch
      %37 = sbr.rel (0) target = $region17
    $region16: #{tpu_custom_call.1} parent=1 // pred_region
      _
    $region17: #{tpu_custom_call.1} parent=1 // pred_fallthru
      _
    // Predicated region
    $region18: #{tpu_custom_call.1} parent=1 // pred_check
      _
    $region19: #{tpu_custom_call.1} parent=1 // pred_check_branch
      %39 = sbr.rel (0) target = $region21
    $region20: #{tpu_custom_call.1} parent=1 // pred_region
      %41 = dma.done [#allocation7], 16
    $region21: #{tpu_custom_call.1} parent=1 // pred_fallthru
      _
    // Predicated region
    $region22: #{tpu_custom_call.1} parent=1 // pred_check
      _
    $region23: #{tpu_custom_call.1} parent=1 // pred_check_branch
      %43 = sbr.rel (0) target = $region25
    $region24: #{tpu_custom_call.1} parent=1 // pred_region
      %45 = dma.done [#allocation5], 3328
    $region25: #{tpu_custom_call.1} parent=1 // pred_fallthru
      _
    %46 = sfence
    %s47 = sld [smem:[#allocation4]]
    %s48 = scalar_lea.vmem %s1, %s47
    %v49 = vld [vmem:[%s48] sm:$0x1]
    %vm50 = vcmask 253952
    %51 = vst.msk [vmem:[#allocation2] sm:$0x1] %vm50, %v49
    %s52 = sld [smem:[#allocation4 + $0x8]]
    %s53 = scalar_lea.vmem %s1, %s52
    %v54 = vld [vmem:[%s53] sm:$0x1]
    %55 = vst.msk [vmem:[#allocation2 + $0x1] sm:$0x1] %vm50, %v54
    %s56 = sld [smem:[#allocation4 + $0x1]]
    %s57 = scalar_lea.vmem %s1, %s56
    %v58 = vld [vmem:[%s57] sm:$0x1]
    %59 = vst.msk [vmem:[#allocation2 + $0x2] sm:$0x1] %vm50, %v58
    %s60 = sld [smem:[#allocation4 + $0x9]]
    %s61 = scalar_lea.vmem %s1, %s60
    %v62 = vld [vmem:[%s61] sm:$0x1]
    %63 = vst.msk [vmem:[#allocation2 + $0x3] sm:$0x1] %vm50, %v62
    %s64 = sld [smem:[#allocation4 + $0x2]]
    %s65 = scalar_lea.vmem %s1, %s64
    %v66 = vld [vmem:[%s65] sm:$0x1]
    %67 = vst.msk [vmem:[#allocation2 + $0x4] sm:$0x1] %vm50, %v66
    %s68 = sld [smem:[#allocation4 + $0xa]]
    %s69 = scalar_lea.vmem %s1, %s68
    %v70 = vld [vmem:[%s69] sm:$0x1]
    %71 = vst.msk [vmem:[#allocation2 + $0x5] sm:$0x1] %vm50, %v70
    %s72 = sld [smem:[#allocation4 + $0x3]]
    %s73 = scalar_lea.vmem %s1, %s72
    %v74 = vld [vmem:[%s73] sm:$0x1]
    %75 = vst.msk [vmem:[#allocation2 + $0x6] sm:$0x1] %vm50, %v74
    %s76 = sld [smem:[#allocation4 + $0xb]]
    %s77 = scalar_lea.vmem %s1, %s76
    %v78 = vld [vmem:[%s77] sm:$0x1]
    %79 = vst.msk [vmem:[#allocation2 + $0x7] sm:$0x1] %vm50, %v78
    %s80 = sld [smem:[#allocation4 + $0x4]]
    %s81 = scalar_lea.vmem %s1, %s80
    %v82 = vld [vmem:[%s81] sm:$0x1]
    %83 = vst.msk [vmem:[#allocation2 + $0x8] sm:$0x1] %vm50, %v82
    %s84 = sld [smem:[#allocation4 + $0xc]]
    %s85 = scalar_lea.vmem %s1, %s84
    %v86 = vld [vmem:[%s85] sm:$0x1]
    %87 = vst.msk [vmem:[#allocation2 + $0x9] sm:$0x1] %vm50, %v86
    %s88 = sld [smem:[#allocation4 + $0x5]]
    %s89 = scalar_lea.vmem %s1, %s88
    %v90 = vld [vmem:[%s89] sm:$0x1]
    %91 = vst.msk [vmem:[#allocation2 + $0xa] sm:$0x1] %vm50, %v90
    %s92 = sld [smem:[#allocation4 + $0xd]]
    %s93 = scalar_lea.vmem %s1, %s92
    %v94 = vld [vmem:[%s93] sm:$0x1]
    %95 = vst.msk [vmem:[#allocation2 + $0xb] sm:$0x1] %vm50, %v94
    %s96 = sld [smem:[#allocation4 + $0x6]]
    %s97 = scalar_lea.vmem %s1, %s96
    %v98 = vld [vmem:[%s97] sm:$0x1]
    %99 = vst.msk [vmem:[#allocation2 + $0xc] sm:$0x1] %vm50, %v98
    %s100 = sld [smem:[#allocation4 + $0xe]]
    %s101 = scalar_lea.vmem %s1, %s100
    %v102 = vld [vmem:[%s101] sm:$0x1]
    %103 = vst.msk [vmem:[#allocation2 + $0xd] sm:$0x1] %vm50, %v102
    %s104 = sld [smem:[#allocation4 + $0x7]]
    %s105 = scalar_lea.vmem %s1, %s104
    %v106 = vld [vmem:[%s105] sm:$0x1]
    %107 = vst.msk [vmem:[#allocation2 + $0xe] sm:$0x1] %vm50, %v106
    %s108 = sld [smem:[#allocation4 + $0xf]]
    %s109 = scalar_lea.vmem %s1, %s108
    %v110 = vld [vmem:[%s109] sm:$0x1]
    %111 = vst.msk [vmem:[#allocation2 + $0xf] sm:$0x1] %vm50, %v110
    %v112 = vld [vmem:[#allocation8] sm:$0xff]
    %v113 = vld [vmem:[#allocation8 + $0x8] sm:$0xff]
    %v114 = vld [vmem:[#allocation8 + $0x10] sm:$0xff]
    %v115 = vld [vmem:[#allocation8 + $0x18] sm:$0xff]
    %v116 = vld [vmem:[#allocation8 + $0x20] sm:$0xff]
    %v117 = vld [vmem:[#allocation8 + $0x28] sm:$0xff]
    %v118 = vld [vmem:[#allocation8 + $0x30] sm:$0xff]
    %v119 = vld [vmem:[#allocation8 + $0x38] sm:$0xff]
    %s120 = scalar_lea.vmem [#allocation8], 192
    %v121 = vld [vmem:[%s120] ss:$8 sm:$0x3]
    %v122 = vld [vmem:[#allocation2] sm:$0xff]
    %v123 = vld [vmem:[#allocation2 + $0x8] sm:$0xff]
    %v125 = vperm.slane %v121, 0
    %v126 = vperm.slane %v121, 1
    %vm129 = vcmask 261120
    %v131 = vsel %vm129, %v122, 0
    %v134 = vsel %vm129, %v123, 0
    %136 = vmatpush.msra.mxu0 0.0
    %137 = vmatpush.msra.mxu0 0.0
    %138 = vmatpush.msra.mxu0 0.0
    %139 = vmatpush.msra.mxu0 0.0
    %140 = vmatpush.msra.mxu0 0.0
    %141 = vmatpush.msra.mxu0 0.0
    %142 = vmatpush.msra.mxu0 0.0
    %143 = vmatpush.msra.mxu0 0.0
    %144 = vmatpush.msra.mxu0 0.0
    %145 = vmatpush.msra.mxu0 0.0
    %146 = vmatpush.msra.mxu0 0.0
    %147 = vmatpush.msra.mxu0 0.0
    %148 = vmatpush.msra.mxu0 %v118
    %149 = vmatpush.msra.mxu0 %v116
    %150 = vmatpush.msra.mxu0 %v114
    %151 = vmatpush.msra.mxu0 %v112
    %152 = vmatmul.f32.gmra.mxu0 %v131
    %v153 = vpop.f32.mrf.mxu0
    %v154 = vadd.f32 %v125, %v153
    %155 = vmatmul.f32.gmra.mxu0 %v134
    %v156 = vpop.f32.mrf.mxu0
    %v157 = vadd.f32 %v125, %v156
    %158 = vdwg.mxu0
    %159 = vmatpush.msra.mxu0 0.0
    %160 = vmatpush.msra.mxu0 0.0
    %161 = vmatpush.msra.mxu0 0.0
    %162 = vmatpush.msra.mxu0 0.0
    %163 = vmatpush.msra.mxu0 0.0
    %164 = vmatpush.msra.mxu0 0.0
    %165 = vmatpush.msra.mxu0 0.0
    %166 = vmatpush.msra.mxu0 0.0
    %167 = vmatpush.msra.mxu0 0.0
    %168 = vmatpush.msra.mxu0 0.0
    %169 = vmatpush.msra.mxu0 0.0
    %170 = vmatpush.msra.mxu0 0.0
    %171 = vmatpush.msra.mxu0 %v119
    %172 = vmatpush.msra.mxu0 %v117
    %173 = vmatpush.msra.mxu0 %v115
    %174 = vmatpush.msra.mxu0 %v113
    %175 = vmatmul.f32.gmra.mxu0 %v131
    %v176 = vpop.f32.mrf.mxu0
    %v177 = vadd.f32 %v126, %v176
    %178 = vmatmul.f32.gmra.mxu0 %v134
    %v179 = vpop.f32.mrf.mxu0
    %v180 = vadd.f32 %v126, %v179
    %181 = vdwg.mxu0
    %182 = vst [vmem:[#allocation3] sm:$0xff] %v154
    %183 = vst [vmem:[#allocation3 + $0x8] sm:$0xff] %v177
    %184 = vst [vmem:[#allocation3 + $0x10] sm:$0xff] %v157
    %185 = vst [vmem:[#allocation3 + $0x18] sm:$0xff] %v180
    %v186 = vld [vmem:[#allocation8 + $0x40] sm:$0xff]
    %v187 = vld [vmem:[#allocation8 + $0x48] sm:$0xff]
    %v188 = vld [vmem:[#allocation8 + $0x50] sm:$0xff]
    %v189 = vld [vmem:[#allocation8 + $0x58] sm:$0xff]
    %v190 = vld [vmem:[#allocation8 + $0x60] sm:$0xff]
    %v191 = vld [vmem:[#allocation8 + $0x68] sm:$0xff]
    %v192 = vld [vmem:[#allocation8 + $0x70] sm:$0xff]
    %v193 = vld [vmem:[#allocation8 + $0x78] sm:$0xff]
    %v194 = vld [vmem:[#allocation8 + $0x80] sm:$0xff]
    %v195 = vld [vmem:[#allocation8 + $0x88] sm:$0xff]
    %v196 = vld [vmem:[#allocation8 + $0x90] sm:$0xff]
    %v197 = vld [vmem:[#allocation8 + $0x98] sm:$0xff]
    %v198 = vld [vmem:[#allocation8 + $0xa0] sm:$0xff]
    %v199 = vld [vmem:[#allocation8 + $0xa8] sm:$0xff]
    %v200 = vld [vmem:[#allocation8 + $0xb0] sm:$0xff]
    %v201 = vld [vmem:[#allocation8 + $0xb8] sm:$0xff]
    %v202 = vlaneseq
    %v203 = vand.u32 %v202, 127
    %v204 = vadd.s32 %v203, 128
    %vm205 = vcmp.lt.s32.totalorder %v203, 0
    %v206 = vsub.s32 0, %v203
    %v207 = vsel %vm205, %v206, %v203
    %v208 = vshrl.u32 %v207, 6
    %v209 = vand.u32 %v207, 63
    %v210 = vsub.s32 0, %v209
    %v211 = vsel %vm205, %v210, %v209
    %vm212 = vcmp.lt.s32.totalorder %v204, 0
    %v213 = vsub.s32 0, %v204
    %v214 = vsel %vm212, %v213, %v204
    %v215 = vshrl.u32 %v214, 6
    %v216 = vand.u32 %v214, 63
    %v217 = vsub.s32 0, %v216
    %v218 = vsel %vm212, %v217, %v216
    %vm219 = vcmp.ne.s32.totalorder %v211, 0
    %vm220 = vcmp.ne.s32.totalorder %v218, 0
    %vm221 = vcmp.lt.s32.totalorder %v211, 0
    %vm222 = vcmp.lt.s32.totalorder %v218, 0
    %vm223 = vmand %vm221, %vm219
    %vm224 = vmand %vm222, %vm220
    %v225 = vadd.s32 %v211, 64
    %v226 = vadd.s32 %v218, 64
    %v227 = vsel %vm223, %v225, %v211
    %v228 = vsel %vm224, %v226, %v218
    %vm229 = vcmp.lt.s32.totalorder %v227, 32
    %vm230 = vcmp.lt.s32.totalorder %v228, 32
    %vm231 = vcmp.ge.s32.totalorder %v203, 128
    %vm232 = vcmp.ge.s32.totalorder %v204, 128
    %vm233 = vcmp.lt.s32.totalorder %v203, 192
    %vm234 = vcmp.lt.s32.totalorder %v204, 192
    %vm235 = vmand %vm231, %vm233
    %vm236 = vmand %vm232, %vm234
    %v237 = vld [vmem:[#allocation3] sm:$0x3]
    %v238 = vld [vmem:[#allocation3 + $0x8] sm:$0x3]
    %v239 = vld [vmem:[#allocation3 + $0x10] sm:$0xc0]
    %v240 = vld [vmem:[#allocation3 + $0x18] sm:$0xc0]
    %v243 = vrot.slane %v239, 6
    %v244 = vrot.slane %v240, 6
    %v247 = vsel %vm229, %v237, %v243
    %v248 = vsel %vm230, %v238, %v244
    %vm249 = vcmask 523264
    %v251 = vsel %vm249, 0.0, 0
    %253 = vmatpush.msra.mxu0 0.0
    %254 = vmatpush.msra.mxu0 0.0
    %255 = vmatpush.msra.mxu0 0.0
    %256 = vmatpush.msra.mxu0 0.0
    %257 = vmatpush.msra.mxu0 0.0
    %258 = vmatpush.msra.mxu0 0.0
    %259 = vmatpush.msra.mxu0 0.0
    %260 = vmatpush.msra.mxu0 0.0
    %261 = vmatpush.msra.mxu0 %v200
    %262 = vmatpush.msra.mxu0 %v198
    %263 = vmatpush.msra.mxu0 %v196
    %264 = vmatpush.msra.mxu0 %v194
    %265 = vmatpush.msra.mxu0 %v192
    %266 = vmatpush.msra.mxu0 %v190
    %267 = vmatpush.msra.mxu0 %v188
    %268 = vmatpush.msra.mxu0 %v186
    %269 = vmatmul.f32.gmra.mxu0 %v251
    %v270 = vpop.f32.mrf.mxu0
    %v271 = vadd.f32 %v247, %v270
    %272 = vdwg.mxu0
    %273 = vmatpush.msra.mxu0 0.0
    %274 = vmatpush.msra.mxu0 0.0
    %275 = vmatpush.msra.mxu0 0.0
    %276 = vmatpush.msra.mxu0 0.0
    %277 = vmatpush.msra.mxu0 0.0
    %278 = vmatpush.msra.mxu0 0.0
    %279 = vmatpush.msra.mxu0 0.0
    %280 = vmatpush.msra.mxu0 0.0
    %281 = vmatpush.msra.mxu0 %v201
    %282 = vmatpush.msra.mxu0 %v199
    %283 = vmatpush.msra.mxu0 %v197
    %284 = vmatpush.msra.mxu0 %v195
    %285 = vmatpush.msra.mxu0 %v193
    %286 = vmatpush.msra.mxu0 %v191
    %287 = vmatpush.msra.mxu0 %v189
    %288 = vmatpush.msra.mxu0 %v187
    %289 = vmatmul.f32.gmra.mxu0 %v251
    %v290 = vpop.f32.mrf.mxu0
    %v291 = vadd.f32 %v248, %v290
    %292 = vdwg.mxu0
    %v293 = vmul.f32 %v271, 0.5
    %v294 = vmul.f32 %v291, 0.5
    %v295 = vsel %vm235, %v271, %v293
    %v296 = vsel %vm236, %v291, %v294
    %v297 = vtanh.pop %v295
    %v298 = vtanh.pop %v296
    %v299 = vmul.f32 %v297, 0.5
    %v300 = vmul.f32 %v298, 0.5
    %v301 = vadd.f32 %v299, 0.5
    %v302 = vadd.f32 %v300, 0.5
    %v303 = vsel %vm235, %v297, %v301
    %v304 = vsel %vm236, %v298, %v302
    %v305 = vmul.f32 %v303, 0.0
    %v306 = vmul.f32 %v303, %v304
    %308 = vrot.lane.b32.xlu0 %v306, 64
    %v309 = vpop.permute.xlu0 %308
    %v311 = vadd.f32 %v305, %v309
    %v312 = vtanh.pop %v311
    %v313 = vmul.f32 %v304, %v312
    %v314 = vld [vmem:[#allocation3] sm:$0xc]
    %v315 = vld [vmem:[#allocation3 + $0x8] sm:$0xc]
    %v316 = vld [vmem:[#allocation3 + $0x10] sm:$0x30]
    %v317 = vld [vmem:[#allocation3 + $0x18] sm:$0x30]
    %v320 = vrot.slane %v316, 2
    %v321 = vrot.slane %v317, 2
    %v324 = vsel %vm229, %v314, %v320
    %v325 = vsel %vm230, %v315, %v321
    %327 = vrot.lane.b32.xlu0 %v313, 64
    %v328 = vpop.permute.xlu0 %327
    %v331 = vrot.slane %v324, 2
    %v332 = vrot.slane %v325, 2
    %v335 = vsel %vm249, %v328, 0
    %337 = vmatpush.msra.mxu0 0.0
    %338 = vmatpush.msra.mxu0 0.0
    %339 = vmatpush.msra.mxu0 0.0
    %340 = vmatpush.msra.mxu0 0.0
    %341 = vmatpush.msra.mxu0 0.0
    %342 = vmatpush.msra.mxu0 0.0
    %343 = vmatpush.msra.mxu0 0.0
    %344 = vmatpush.msra.mxu0 0.0
    %345 = vmatpush.msra.mxu0 %v200
    %346 = vmatpush.msra.mxu0 %v198
    %347 = vmatpush.msra.mxu0 %v196
    %348 = vmatpush.msra.mxu0 %v194
    %349 = vmatpush.msra.mxu0 %v192
    %350 = vmatpush.msra.mxu0 %v190
    %351 = vmatpush.msra.mxu0 %v188
    %352 = vmatpush.msra.mxu0 %v186
    %353 = vmatmul.f32.gmra.mxu0 %v335
    %v354 = vpop.f32.mrf.mxu0
    %v355 = vadd.f32 %v331, %v354
    %356 = vdwg.mxu0
    %357 = vmatpush.msra.mxu0 0.0
    %358 = vmatpush.msra.mxu0 0.0
    %359 = vmatpush.msra.mxu0 0.0
    %360 = vmatpush.msra.mxu0 0.0
    %361 = vmatpush.msra.mxu0 0.0
    %362 = vmatpush.msra.mxu0 0.0
    %363 = vmatpush.msra.mxu0 0.0
    %364 = vmatpush.msra.mxu0 0.0
    %365 = vmatpush.msra.mxu0 %v201
    %366 = vmatpush.msra.mxu0 %v199
    %367 = vmatpush.msra.mxu0 %v197
    %368 = vmatpush.msra.mxu0 %v195
    %369 = vmatpush.msra.mxu0 %v193
    %370 = vmatpush.msra.mxu0 %v191
    %371 = vmatpush.msra.mxu0 %v189
    %372 = vmatpush.msra.mxu0 %v187
    %373 = vmatmul.f32.gmra.mxu0 %v335
    %v374 = vpop.f32.mrf.mxu0
    %v375 = vadd.f32 %v332, %v374
    %376 = vdwg.mxu0
    %v377 = vmul.f32 %v355, 0.5
    %v378 = vmul.f32 %v375, 0.5
    %v379 = vsel %vm235, %v355, %v377
    %v380 = vsel %vm236, %v375, %v378
    %v381 = vtanh.pop %v379
    %v382 = vtanh.pop %v380
    %v383 = vmul.f32 %v381, 0.5
    %v384 = vmul.f32 %v382, 0.5
    %v385 = vadd.f32 %v383, 0.5
    %v386 = vadd.f32 %v384, 0.5
    %v387 = vsel %vm235, %v381, %v385
    %v388 = vsel %vm236, %v382, %v386
    %v389 = vmul.f32 %v387, %v311
    %v390 = vmul.f32 %v387, %v388
    %392 = vrot.lane.b32.xlu0 %v390, 64
    %v393 = vpop.permute.xlu0 %392
    %v395 = vadd.f32 %v389, %v393
    %v396 = vtanh.pop %v395
    %v397 = vmul.f32 %v388, %v396
    %v398 = vld [vmem:[#allocation3] sm:$0x30]
    %v399 = vld [vmem:[#allocation3 + $0x8] sm:$0x30]
    %v400 = vld [vmem:[#allocation3 + $0x10] sm:$0xc]
    %v401 = vld [vmem:[#allocation3 + $0x18] sm:$0xc]
    %v404 = vrot.slane %v400, 6
    %v405 = vrot.slane %v401, 6
    %v408 = vsel %vm229, %v398, %v404
    %v409 = vsel %vm230, %v399, %v405
    %411 = vrot.lane.b32.xlu0 %v397, 64
    %v412 = vpop.permute.xlu0 %411
    %v415 = vrot.slane %v408, 4
    %v416 = vrot.slane %v409, 4
    %v419 = vsel %vm249, %v412, 0
    %421 = vmatpush.msra.mxu0 0.0
    %422 = vmatpush.msra.mxu0 0.0
    %423 = vmatpush.msra.mxu0 0.0
    %424 = vmatpush.msra.mxu0 0.0
    %425 = vmatpush.msra.mxu0 0.0
    %426 = vmatpush.msra.mxu0 0.0
    %427 = vmatpush.msra.mxu0 0.0
    %428 = vmatpush.msra.mxu0 0.0
    %429 = vmatpush.msra.mxu0 %v200
    %430 = vmatpush.msra.mxu0 %v198
    %431 = vmatpush.msra.mxu0 %v196
    %432 = vmatpush.msra.mxu0 %v194
    %433 = vmatpush.msra.mxu0 %v192
    %434 = vmatpush.msra.mxu0 %v190
    %435 = vmatpush.msra.mxu0 %v188
    %436 = vmatpush.msra.mxu0 %v186
    %437 = vmatmul.f32.gmra.mxu0 %v419
    %v438 = vpop.f32.mrf.mxu0
    %v439 = vadd.f32 %v415, %v438
    %440 = vdwg.mxu0
    %441 = vmatpush.msra.mxu0 0.0
    %442 = vmatpush.msra.mxu0 0.0
    %443 = vmatpush.msra.mxu0 0.0
    %444 = vmatpush.msra.mxu0 0.0
    %445 = vmatpush.msra.mxu0 0.0
    %446 = vmatpush.msra.mxu0 0.0
    %447 = vmatpush.msra.mxu0 0.0
    %448 = vmatpush.msra.mxu0 0.0
    %449 = vmatpush.msra.mxu0 %v201
    %450 = vmatpush.msra.mxu0 %v199
    %451 = vmatpush.msra.mxu0 %v197
    %452 = vmatpush.msra.mxu0 %v195
    %453 = vmatpush.msra.mxu0 %v193
    %454 = vmatpush.msra.mxu0 %v191
    %455 = vmatpush.msra.mxu0 %v189
    %456 = vmatpush.msra.mxu0 %v187
    %457 = vmatmul.f32.gmra.mxu0 %v419
    %v458 = vpop.f32.mrf.mxu0
    %v459 = vadd.f32 %v416, %v458
    %460 = vdwg.mxu0
    %v461 = vmul.f32 %v439, 0.5
    %v462 = vmul.f32 %v459, 0.5
    %v463 = vsel %vm235, %v439, %v461
    %v464 = vsel %vm236, %v459, %v462
    %v465 = vtanh.pop %v463
    %v466 = vtanh.pop %v464
    %v467 = vmul.f32 %v465, 0.5
    %v468 = vmul.f32 %v466, 0.5
    %v469 = vadd.f32 %v467, 0.5
    %v470 = vadd.f32 %v468, 0.5
    %v471 = vsel %vm235, %v465, %v469
    %v472 = vsel %vm236, %v466, %v470
    %v473 = vmul.f32 %v471, %v395
    %v474 = vmul.f32 %v471, %v472
    %476 = vrot.lane.b32.xlu0 %v474, 64
    %v477 = vpop.permute.xlu0 %476
    %v479 = vadd.f32 %v473, %v477
    %v480 = vtanh.pop %v479
    %v481 = vmul.f32 %v472, %v480
    %v482 = vld [vmem:[#allocation3] sm:$0xc0]
    %v483 = vld [vmem:[#allocation3 + $0x8] sm:$0xc0]
    %v484 = vld [vmem:[#allocation3 + $0x10] sm:$0x3]
    %v485 = vld [vmem:[#allocation3 + $0x18] sm:$0x3]
    %v488 = vrot.slane %v484, 2
    %v489 = vrot.slane %v485, 2
    %v492 = vsel %vm229, %v482, %v488
    %v493 = vsel %vm230, %v483, %v489
    %495 = vrot.lane.b32.xlu0 %v481, 64
    %v496 = vpop.permute.xlu0 %495
    %v499 = vrot.slane %v492, 6
    %v500 = vrot.slane %v493, 6
    %v503 = vsel %vm249, %v496, 0
    %505 = vmatpush.msra.mxu0 0.0
    %506 = vmatpush.msra.mxu0 0.0
    %507 = vmatpush.msra.mxu0 0.0
    %508 = vmatpush.msra.mxu0 0.0
    %509 = vmatpush.msra.mxu0 0.0
    %510 = vmatpush.msra.mxu0 0.0
    %511 = vmatpush.msra.mxu0 0.0
    %512 = vmatpush.msra.mxu0 0.0
    %513 = vmatpush.msra.mxu0 %v200
    %514 = vmatpush.msra.mxu0 %v198
    %515 = vmatpush.msra.mxu0 %v196
    %516 = vmatpush.msra.mxu0 %v194
    %517 = vmatpush.msra.mxu0 %v192
    %518 = vmatpush.msra.mxu0 %v190
    %519 = vmatpush.msra.mxu0 %v188
    %520 = vmatpush.msra.mxu0 %v186
    %521 = vmatmul.f32.gmra.mxu0 %v503
    %v522 = vpop.f32.mrf.mxu0
    %v523 = vadd.f32 %v499, %v522
    %524 = vdwg.mxu0
    %525 = vmatpush.msra.mxu0 0.0
    %526 = vmatpush.msra.mxu0 0.0
    %527 = vmatpush.msra.mxu0 0.0
    %528 = vmatpush.msra.mxu0 0.0
    %529 = vmatpush.msra.mxu0 0.0
    %530 = vmatpush.msra.mxu0 0.0
    %531 = vmatpush.msra.mxu0 0.0
    %532 = vmatpush.msra.mxu0 0.0
    %533 = vmatpush.msra.mxu0 %v201
    %534 = vmatpush.msra.mxu0 %v199
    %535 = vmatpush.msra.mxu0 %v197
    %536 = vmatpush.msra.mxu0 %v195
    %537 = vmatpush.msra.mxu0 %v193
    %538 = vmatpush.msra.mxu0 %v191
    %539 = vmatpush.msra.mxu0 %v189
    %540 = vmatpush.msra.mxu0 %v187
    %541 = vmatmul.f32.gmra.mxu0 %v503
    %v542 = vpop.f32.mrf.mxu0
    %v543 = vadd.f32 %v500, %v542
    %544 = vdwg.mxu0
    %v545 = vmul.f32 %v523, 0.5
    %v546 = vmul.f32 %v543, 0.5
    %v547 = vsel %vm235, %v523, %v545
    %v548 = vsel %vm236, %v543, %v546
    %v549 = vtanh.pop %v547
    %v550 = vtanh.pop %v548
    %v551 = vmul.f32 %v549, 0.5
    %v552 = vmul.f32 %v550, 0.5
    %v553 = vadd.f32 %v551, 0.5
    %v554 = vadd.f32 %v552, 0.5
    %v555 = vsel %vm235, %v549, %v553
    %v556 = vsel %vm236, %v550, %v554
    %v557 = vmul.f32 %v555, %v479
    %v558 = vmul.f32 %v555, %v556
    %560 = vrot.lane.b32.xlu0 %v558, 64
    %v561 = vpop.permute.xlu0 %560
    %v563 = vadd.f32 %v557, %v561
    %v564 = vtanh.pop %v563
    %v565 = vmul.f32 %v556, %v564
    %v568 = vrot.slane %v482, 6
    %v569 = vrot.slane %v483, 6
    %v572 = vsel %vm229, %v484, %v568
    %v573 = vsel %vm230, %v485, %v569
    %575 = vrot.lane.b32.xlu0 %v565, 64
    %v576 = vpop.permute.xlu0 %575
    %v577 = vsel %vm249, %v576, 0
    %579 = vmatpush.msra.mxu0 0.0
    %580 = vmatpush.msra.mxu0 0.0
    %581 = vmatpush.msra.mxu0 0.0
    %582 = vmatpush.msra.mxu0 0.0
    %583 = vmatpush.msra.mxu0 0.0
    %584 = vmatpush.msra.mxu0 0.0
    %585 = vmatpush.msra.mxu0 0.0
    %586 = vmatpush.msra.mxu0 0.0
    %587 = vmatpush.msra.mxu0 %v200
    %588 = vmatpush.msra.mxu0 %v198
    %589 = vmatpush.msra.mxu0 %v196
    %590 = vmatpush.msra.mxu0 %v194
    %591 = vmatpush.msra.mxu0 %v192
    %592 = vmatpush.msra.mxu0 %v190
    %593 = vmatpush.msra.mxu0 %v188
    %594 = vmatpush.msra.mxu0 %v186
    %595 = vmatmul.f32.gmra.mxu0 %v577
    %v596 = vpop.f32.mrf.mxu0
    %v597 = vadd.f32 %v572, %v596
    %598 = vdwg.mxu0
    %599 = vmatpush.msra.mxu0 0.0
    %600 = vmatpush.msra.mxu0 0.0
    %601 = vmatpush.msra.mxu0 0.0
    %602 = vmatpush.msra.mxu0 0.0
    %603 = vmatpush.msra.mxu0 0.0
    %604 = vmatpush.msra.mxu0 0.0
    %605 = vmatpush.msra.mxu0 0.0
    %606 = vmatpush.msra.mxu0 0.0
    %607 = vmatpush.msra.mxu0 %v201
    %608 = vmatpush.msra.mxu0 %v199
    %609 = vmatpush.msra.mxu0 %v197
    %610 = vmatpush.msra.mxu0 %v195
    %611 = vmatpush.msra.mxu0 %v193
    %612 = vmatpush.msra.mxu0 %v191
    %613 = vmatpush.msra.mxu0 %v189
    %614 = vmatpush.msra.mxu0 %v187
    %615 = vmatmul.f32.gmra.mxu0 %v577
    %v616 = vpop.f32.mrf.mxu0
    %v617 = vadd.f32 %v573, %v616
    %618 = vdwg.mxu0
    %v619 = vmul.f32 %v597, 0.5
    %v620 = vmul.f32 %v617, 0.5
    %v621 = vsel %vm235, %v597, %v619
    %v622 = vsel %vm236, %v617, %v620
    %v623 = vtanh.pop %v621
    %v624 = vtanh.pop %v622
    %v625 = vmul.f32 %v623, 0.5
    %v626 = vmul.f32 %v624, 0.5
    %v627 = vadd.f32 %v625, 0.5
    %v628 = vadd.f32 %v626, 0.5
    %v629 = vsel %vm235, %v623, %v627
    %v630 = vsel %vm236, %v624, %v628
    %v631 = vmul.f32 %v629, %v563
    %v632 = vmul.f32 %v629, %v630
    %634 = vrot.lane.b32.xlu0 %v632, 64
    %v635 = vpop.permute.xlu0 %634
    %v637 = vadd.f32 %v631, %v635
    %v638 = vtanh.pop %v637
    %v639 = vmul.f32 %v630, %v638
    %v642 = vrot.slane %v398, 2
    %v643 = vrot.slane %v399, 2
    %v646 = vsel %vm229, %v400, %v642
    %v647 = vsel %vm230, %v401, %v643
    %649 = vrot.lane.b32.xlu0 %v639, 64
    %v650 = vpop.permute.xlu0 %649
    %v653 = vrot.slane %v646, 2
    %v654 = vrot.slane %v647, 2
    %v657 = vsel %vm249, %v650, 0
    %659 = vmatpush.msra.mxu0 0.0
    %660 = vmatpush.msra.mxu0 0.0
    %661 = vmatpush.msra.mxu0 0.0
    %662 = vmatpush.msra.mxu0 0.0
    %663 = vmatpush.msra.mxu0 0.0
    %664 = vmatpush.msra.mxu0 0.0
    %665 = vmatpush.msra.mxu0 0.0
    %666 = vmatpush.msra.mxu0 0.0
    %667 = vmatpush.msra.mxu0 %v200
    %668 = vmatpush.msra.mxu0 %v198
    %669 = vmatpush.msra.mxu0 %v196
    %670 = vmatpush.msra.mxu0 %v194
    %671 = vmatpush.msra.mxu0 %v192
    %672 = vmatpush.msra.mxu0 %v190
    %673 = vmatpush.msra.mxu0 %v188
    %674 = vmatpush.msra.mxu0 %v186
    %675 = vmatmul.f32.gmra.mxu0 %v657
    %v676 = vpop.f32.mrf.mxu0
    %v677 = vadd.f32 %v653, %v676
    %678 = vdwg.mxu0
    %679 = vmatpush.msra.mxu0 0.0
    %680 = vmatpush.msra.mxu0 0.0
    %681 = vmatpush.msra.mxu0 0.0
    %682 = vmatpush.msra.mxu0 0.0
    %683 = vmatpush.msra.mxu0 0.0
    %684 = vmatpush.msra.mxu0 0.0
    %685 = vmatpush.msra.mxu0 0.0
    %686 = vmatpush.msra.mxu0 0.0
    %687 = vmatpush.msra.mxu0 %v201
    %688 = vmatpush.msra.mxu0 %v199
    %689 = vmatpush.msra.mxu0 %v197
    %690 = vmatpush.msra.mxu0 %v195
    %691 = vmatpush.msra.mxu0 %v193
    %692 = vmatpush.msra.mxu0 %v191
    %693 = vmatpush.msra.mxu0 %v189
    %694 = vmatpush.msra.mxu0 %v187
    %695 = vmatmul.f32.gmra.mxu0 %v657
    %v696 = vpop.f32.mrf.mxu0
    %v697 = vadd.f32 %v654, %v696
    %698 = vdwg.mxu0
    %v699 = vmul.f32 %v677, 0.5
    %v700 = vmul.f32 %v697, 0.5
    %v701 = vsel %vm235, %v677, %v699
    %v702 = vsel %vm236, %v697, %v700
    %v703 = vtanh.pop %v701
    %v704 = vtanh.pop %v702
    %v705 = vmul.f32 %v703, 0.5
    %v706 = vmul.f32 %v704, 0.5
    %v707 = vadd.f32 %v705, 0.5
    %v708 = vadd.f32 %v706, 0.5
    %v709 = vsel %vm235, %v703, %v707
    %v710 = vsel %vm236, %v704, %v708
    %v711 = vmul.f32 %v709, %v637
    %v712 = vmul.f32 %v709, %v710
    %714 = vrot.lane.b32.xlu0 %v712, 64
    %v715 = vpop.permute.xlu0 %714
    %v717 = vadd.f32 %v711, %v715
    %v718 = vtanh.pop %v717
    %v719 = vmul.f32 %v710, %v718
    %v722 = vrot.slane %v314, 6
    %v723 = vrot.slane %v315, 6
    %v726 = vsel %vm229, %v316, %v722
    %v727 = vsel %vm230, %v317, %v723
    %729 = vrot.lane.b32.xlu0 %v719, 64
    %v730 = vpop.permute.xlu0 %729
    %v733 = vrot.slane %v726, 4
    %v734 = vrot.slane %v727, 4
    %v737 = vsel %vm249, %v730, 0
    %739 = vmatpush.msra.mxu0 0.0
    %740 = vmatpush.msra.mxu0 0.0
    %741 = vmatpush.msra.mxu0 0.0
    %742 = vmatpush.msra.mxu0 0.0
    %743 = vmatpush.msra.mxu0 0.0
    %744 = vmatpush.msra.mxu0 0.0
    %745 = vmatpush.msra.mxu0 0.0
    %746 = vmatpush.msra.mxu0 0.0
    %747 = vmatpush.msra.mxu0 %v200
    %748 = vmatpush.msra.mxu0 %v198
    %749 = vmatpush.msra.mxu0 %v196
    %750 = vmatpush.msra.mxu0 %v194
    %751 = vmatpush.msra.mxu0 %v192
    %752 = vmatpush.msra.mxu0 %v190
    %753 = vmatpush.msra.mxu0 %v188
    %754 = vmatpush.msra.mxu0 %v186
    %755 = vmatmul.f32.gmra.mxu0 %v737
    %v756 = vpop.f32.mrf.mxu0
    %v757 = vadd.f32 %v733, %v756
    %758 = vdwg.mxu0
    %759 = vmatpush.msra.mxu0 0.0
    %760 = vmatpush.msra.mxu0 0.0
    %761 = vmatpush.msra.mxu0 0.0
    %762 = vmatpush.msra.mxu0 0.0
    %763 = vmatpush.msra.mxu0 0.0
    %764 = vmatpush.msra.mxu0 0.0
    %765 = vmatpush.msra.mxu0 0.0
    %766 = vmatpush.msra.mxu0 0.0
    %767 = vmatpush.msra.mxu0 %v201
    %768 = vmatpush.msra.mxu0 %v199
    %769 = vmatpush.msra.mxu0 %v197
    %770 = vmatpush.msra.mxu0 %v195
    %771 = vmatpush.msra.mxu0 %v193
    %772 = vmatpush.msra.mxu0 %v191
    %773 = vmatpush.msra.mxu0 %v189
    %774 = vmatpush.msra.mxu0 %v187
    %775 = vmatmul.f32.gmra.mxu0 %v737
    %v776 = vpop.f32.mrf.mxu0
    %v777 = vadd.f32 %v734, %v776
    %778 = vdwg.mxu0
    %v779 = vmul.f32 %v757, 0.5
    %v780 = vmul.f32 %v777, 0.5
    %v781 = vsel %vm235, %v757, %v779
    %v782 = vsel %vm236, %v777, %v780
    %v783 = vtanh.pop %v781
    %v784 = vtanh.pop %v782
    %v785 = vmul.f32 %v783, 0.5
    %v786 = vmul.f32 %v784, 0.5
    %v787 = vadd.f32 %v785, 0.5
    %v788 = vadd.f32 %v786, 0.5
    %v789 = vsel %vm235, %v783, %v787
    %v790 = vsel %vm236, %v784, %v788
    %v791 = vmul.f32 %v789, %v717
    %v792 = vmul.f32 %v789, %v790
    %794 = vrot.lane.b32.xlu0 %v792, 64
    %v795 = vpop.permute.xlu0 %794
    %v797 = vadd.f32 %v791, %v795
    %v798 = vtanh.pop %v797
    %v799 = vmul.f32 %v790, %v798
    %v802 = vrot.slane %v237, 2
    %v803 = vrot.slane %v238, 2
    %v806 = vsel %vm229, %v239, %v802
    %v807 = vsel %vm230, %v240, %v803
    %809 = vrot.lane.b32.xlu0 %v799, 64
    %v810 = vpop.permute.xlu0 %809
    %v813 = vrot.slane %v806, 6
    %v814 = vrot.slane %v807, 6
    %v817 = vsel %vm249, %v810, 0
    %819 = vmatpush.msra.mxu0 0.0
    %820 = vmatpush.msra.mxu0 0.0
    %821 = vmatpush.msra.mxu0 0.0
    %822 = vmatpush.msra.mxu0 0.0
    %823 = vmatpush.msra.mxu0 0.0
    %824 = vmatpush.msra.mxu0 0.0
    %825 = vmatpush.msra.mxu0 0.0
    %826 = vmatpush.msra.mxu0 0.0
    %827 = vmatpush.msra.mxu0 %v200
    %828 = vmatpush.msra.mxu0 %v198
    %829 = vmatpush.msra.mxu0 %v196
    %830 = vmatpush.msra.mxu0 %v194
    %831 = vmatpush.msra.mxu0 %v192
    %832 = vmatpush.msra.mxu0 %v190
    %833 = vmatpush.msra.mxu0 %v188
    %834 = vmatpush.msra.mxu0 %v186
    %835 = vmatmul.f32.gmra.mxu0 %v817
    %v836 = vpop.f32.mrf.mxu0
    %v837 = vadd.f32 %v813, %v836
    %838 = vdwg.mxu0
    %839 = vmatpush.msra.mxu0 0.0
    %840 = vmatpush.msra.mxu0 0.0
    %841 = vmatpush.msra.mxu0 0.0
    %842 = vmatpush.msra.mxu0 0.0
    %843 = vmatpush.msra.mxu0 0.0
    %844 = vmatpush.msra.mxu0 0.0
    %845 = vmatpush.msra.mxu0 0.0
    %846 = vmatpush.msra.mxu0 0.0
    %847 = vmatpush.msra.mxu0 %v201
    %848 = vmatpush.msra.mxu0 %v199
    %849 = vmatpush.msra.mxu0 %v197
    %850 = vmatpush.msra.mxu0 %v195
    %851 = vmatpush.msra.mxu0 %v193
    %852 = vmatpush.msra.mxu0 %v191
    %853 = vmatpush.msra.mxu0 %v189
    %854 = vmatpush.msra.mxu0 %v187
    %855 = vmatmul.f32.gmra.mxu0 %v817
    %v856 = vpop.f32.mrf.mxu0
    %v857 = vadd.f32 %v814, %v856
    %858 = vdwg.mxu0
    %v859 = vmul.f32 %v837, 0.5
    %v860 = vmul.f32 %v857, 0.5
    %v861 = vsel %vm235, %v837, %v859
    %v862 = vsel %vm236, %v857, %v860
    %v863 = vtanh.pop %v861
    %v864 = vtanh.pop %v862
    %v865 = vmul.f32 %v863, 0.5
    %v866 = vmul.f32 %v864, 0.5
    %v867 = vadd.f32 %v865, 0.5
    %v868 = vadd.f32 %v866, 0.5
    %v869 = vsel %vm235, %v863, %v867
    %v870 = vsel %vm236, %v864, %v868
    %v871 = vmul.f32 %v869, %v797
    %v872 = vmul.f32 %v869, %v870
    %874 = vrot.lane.b32.xlu0 %v872, 64
    %v875 = vpop.permute.xlu0 %874
    %v877 = vadd.f32 %v871, %v875
    %v878 = vtanh.pop %v877
    %v879 = vmul.f32 %v870, %v878
    %v880 = vld [vmem:[%s3] sm:$0xff]
    %v881 = vld [vmem:[%s3 + $0x8] sm:$0xff]
    %v882 = vld [vmem:[%s3 + $0x10] sm:$0xff]
    %v883 = vld [vmem:[%s3 + $0x18] sm:$0xff]
    %v884 = vld [vmem:[%s3 + $0x20] sm:$0xff]
    %v885 = vld [vmem:[%s3 + $0x28] sm:$0xff]
    %v886 = vld [vmem:[%s3 + $0x30] sm:$0xff]
    %v887 = vld [vmem:[%s3 + $0x38] sm:$0xff]
    %v888 = vld [vmem:[%s3 + $0x40] sm:$0x1]
    %v889 = vperm.slane %v888, 0
    %891 = vrot.lane.b32.xlu0 %v879, 64
    %v892 = vpop.permute.xlu0 %891
    %v893 = vsel %vm249, %v892, 0
    %895 = vmatpush.msra.mxu0 0.0
    %896 = vmatpush.msra.mxu0 0.0
    %897 = vmatpush.msra.mxu0 0.0
    %898 = vmatpush.msra.mxu0 0.0
    %899 = vmatpush.msra.mxu0 0.0
    %900 = vmatpush.msra.mxu0 0.0
    %901 = vmatpush.msra.mxu0 0.0
    %902 = vmatpush.msra.mxu0 0.0
    %903 = vmatpush.msra.mxu0 %v887
    %904 = vmatpush.msra.mxu0 %v886
    %905 = vmatpush.msra.mxu0 %v885
    %906 = vmatpush.msra.mxu0 %v884
    %907 = vmatpush.msra.mxu0 %v883
    %908 = vmatpush.msra.mxu0 %v882
    %909 = vmatpush.msra.mxu0 %v881
    %910 = vmatpush.msra.mxu0 %v880
    %911 = vmatmul.f32.gmra.mxu0 %v893
    %v912 = vpop.f32.mrf.mxu0
    %v913 = vadd.f32 %v889, %v912
    %914 = vdwg.mxu0
    %vm915 = vcmask 58368
    %916 = vst.msk [vmem:[#allocation9] sm:$0x3] %vm915, %v913
    // Predicated region
    $region26: #{tpu_custom_call.1} parent=1 // pred_check
      _
    $region27: #{tpu_custom_call.1} parent=1 // pred_check_branch
      %918 = sbr.rel (0) target = $region29
    $region28: #{tpu_custom_call.1} parent=1 // pred_region
      %920 = vsyncadd [#allocation6], 0
      %s922 = sshll.u32 [#allocation9], 4
      %s923 = int_to_ptr.vmem [resolvable:$true] %s922
      %s924 = sshll.u32 %s4, 4
      %s925 = int_to_ptr.hbm [resolvable:$true] %s924
      %927 = dma.vmem_to_hbm [thread:$0]  %s923, 32, %s925, [#allocation6]
    $region29: #{tpu_custom_call.1} parent=1 // pred_fallthru
      _
    // Predicated region
    $region30: #{tpu_custom_call.1} parent=1 // pred_check
      _
    $region31: #{tpu_custom_call.1} parent=1 // pred_check_branch
      %929 = sbr.rel (0) target = $region33
    $region32: #{tpu_custom_call.1} parent=1 // pred_region
      %931 = dma.done [#allocation6], 32
    $region33: #{tpu_custom_call.1} parent=1 // pred_fallthru
      _
    %932 = vsyncpa [#allocation5], 1
    %933 = vsyncpa [#allocation6], 1
    %934 = vsyncpa [#allocation7], 1

</llo_original>
